<compile_context>
chip_gen: v7x
topology: tpu7x:2x2x1
jax: 0.10.0
libtpu: 0.0.40
codegen_flags: <defaults>
</compile_context>

<pallas_src>
import functools

import jax
import jax.numpy as jnp
from jax import lax
from jax.experimental import pallas as pl
from jax.experimental.pallas import tpu as pltpu

K_ITERS = 10   # APPNP K
ALPHA = 0.1    # APPNP alpha
LANE = 128     # TPU lane width


def appnp_kernel(x_ref, w1_ref, b1_ref, w2_ref, b2_ref, a_ref, out_ref,
                 ah0_ref, *, num_classes):
    # x: [N, Fin] f32, w1: [Fin, Hp] bf16, b1: [1, Hp] f32,
    # w2: [Hp, Cp] bf16, b2: [1, Cp] f32,
    # a:  [N, N]  bf16 with (1 - alpha) pre-folded,
    # ah0_ref: [N, Cp] f32 VMEM scratch (teleport term alpha * h0).
    x = x_ref[...].astype(jnp.bfloat16)

    # lin1 + relu (bf16 MXU operands, f32 accumulation + elementwise).
    h = jnp.dot(x, w1_ref[...], preferred_element_type=jnp.float32) + b1_ref[...]
    h = jnp.maximum(h, 0.0)

    # lin2 -> teleport term h0 (padded class columns are exactly zero).
    h0 = jnp.dot(h.astype(jnp.bfloat16), w2_ref[...],
                 preferred_element_type=jnp.float32) + b2_ref[...]

    # Park alpha * h0 in VMEM scratch so it isn't live in vregs for 10 iters.
    ah0_ref[...] = ALPHA * h0

    # APPNP propagation: z <- ((1-alpha) * A_hat) @ z + alpha * h0.
    # Statically unrolled; the LHS is read from the VMEM ref each step so the
    # 8 bf16 A vregs are not held across the whole unrolled loop.
    z = h0
    for _ in range(K_ITERS):
        z = jnp.dot(a_ref[...], z.astype(jnp.bfloat16),
                    preferred_element_type=jnp.float32) + ah0_ref[...]
    # TODO(synk): if batching >=2 graphs, interleave two dependent chains here
    # to hide per-step MXU result-drain latency on v5e/v6e.

    # log_softmax over the true class columns only (padding masked out).
    col = lax.broadcasted_iota(jnp.int32, z.shape, 1)
    valid = col < num_classes
    zm = jnp.where(valid, z, -1e30)
    m = jnp.max(zm, axis=1, keepdims=True)
    s = zm - m
    lse = jnp.log(jnp.sum(jnp.where(valid, jnp.exp(s), 0.0),
                          axis=1, keepdims=True))
    out_ref[...] = s - lse             # lane-dense [N, Cp] store (unmasked vst)


def build_appnp_params(w1, b1, w2, b2, a_hat):
    """One-time preprocessing (constant across forwards):
    zero-pad hidden/class dims to lane width, cast MXU weight operands to
    bf16, fold (1 - alpha) into A_hat and cast it to bf16."""
    f_in, hid = w1.shape
    c = w2.shape[1]
    hid_p = pl.cdiv(hid, LANE) * LANE
    c_p = pl.cdiv(c, LANE) * LANE

    w1p = jnp.zeros((f_in, hid_p), jnp.bfloat16).at[:, :hid].set(
        w1.astype(jnp.bfloat16))
    b1p = jnp.zeros((1, hid_p), jnp.float32).at[:, :hid].set(b1)
    w2p = jnp.zeros((hid_p, c_p), jnp.bfloat16).at[:hid, :c].set(
        w2.astype(jnp.bfloat16))
    b2p = jnp.zeros((1, c_p), jnp.float32).at[:, :c].set(b2)
    a_scaled = ((1.0 - ALPHA) * a_hat).astype(jnp.bfloat16)
    return w1p, b1p, w2p, b2p, a_scaled, c


@functools.partial(jax.jit, static_argnames=("num_classes",))
def appnp_net_forward(x, w1p, b1p, w2p, b2p, a_scaled, *, num_classes):
    n = x.shape[0]
    c_p = w2p.shape[1]
    vmem = pl.BlockSpec(memory_space=pltpu.MemorySpace.VMEM)
    out = pl.pallas_call(
        functools.partial(appnp_kernel, num_classes=num_classes),
        out_shape=jax.ShapeDtypeStruct((n, c_p), jnp.float32),
        in_specs=[vmem] * 6,
        out_specs=vmem,
        scratch_shapes=[pltpu.VMEM((n, c_p), jnp.float32)],
    )(x, w1p, b1p, w2p, b2p, a_scaled)
    return out[:, :num_classes]


def build_normalized_adjacency(edge_index, num_nodes):
    """Dense GCN-normalized adjacency with self-loops: D^-1/2 (A + I) D^-1/2.

    Binary (unweighted) adjacency: duplicate edges collapse to 1 and existing
    self-loops are not double-counted (diagonal forced to exactly 1.0)."""
    src, dst = edge_index
    a = jnp.zeros((num_nodes, num_nodes), jnp.float32)
    a = a.at[src, dst].set(1.0)
    a = jnp.where(jnp.eye(num_nodes, dtype=bool), 1.0, a)
    deg = jnp.sum(a, axis=1)
    dinv = jnp.where(deg > 0, lax.rsqrt(deg), 0.0)
    return dinv[:, None] * a * dinv[None, :]


def reference_forward_f32(x, w1, b1, w2, b2, a_hat):
    """Exact PyTorch-semantics forward (eval mode) in f32."""
    h = jnp.maximum(x @ w1 + b1, 0.0)
    h0 = h @ w2 + b2
    z = h0
    for _ in range(K_ITERS):
        z = (1.0 - ALPHA) * (a_hat @ z) + ALPHA * h0
    return jax.nn.log_softmax(z, axis=1)


def reference_forward_mirrored(x, w1, b1, w2, b2, a_hat):
    """Plain-JAX reference mirroring the kernel's numerics: bf16 MXU operands
    (x, weights, A_hat, z), f32 accumulation + f32 elementwise."""
    xb = x.astype(jnp.bfloat16)
    w1b = w1.astype(jnp.bfloat16)
    w2b = w2.astype(jnp.bfloat16)
    h = jnp.maximum(
        jnp.dot(xb, w1b, preferred_element_type=jnp.float32) + b1, 0.0)
    h0 = jnp.dot(h.astype(jnp.bfloat16), w2b,
                 preferred_element_type=jnp.float32) + b2
    a_q = ((1.0 - ALPHA) * a_hat).astype(jnp.bfloat16)
    ah0 = ALPHA * h0
    z = h0
    for _ in range(K_ITERS):
        z = jnp.dot(a_q, z.astype(jnp.bfloat16),
                    preferred_element_type=jnp.float32) + ah0
    return jax.nn.log_softmax(z, axis=1)


if __name__ == "__main__":
    key = jax.random.PRNGKey(0)
    # N = 128 so the K propagation matmuls are full 128x128x128 MXU tiles.
    N, F_IN, HID, C = 128, 16, 32, 8
    NUM_EDGES = 256

    k_x, k_w1, k_b1, k_w2, k_b2, k_e = jax.random.split(key, 6)

    x = jax.random.normal(k_x, (N, F_IN), jnp.float32)

    # PyTorch-Linear-style init: U(-1/sqrt(fan_in), +1/sqrt(fan_in)),
    # weights stored as [in, out] (transposed from Linear.weight).
    w1 = jax.random.uniform(k_w1, (F_IN, HID), jnp.float32,
                            -1.0 / jnp.sqrt(F_IN), 1.0 / jnp.sqrt(F_IN))
    b1 = jax.random.uniform(k_b1, (1, HID), jnp.float32,
                            -1.0 / jnp.sqrt(F_IN), 1.0 / jnp.sqrt(F_IN))
    w2 = jax.random.uniform(k_w2, (HID, C), jnp.float32,
                            -1.0 / jnp.sqrt(HID), 1.0 / jnp.sqrt(HID))
    b2 = jax.random.uniform(k_b2, (1, C), jnp.float32,
                            -1.0 / jnp.sqrt(HID), 1.0 / jnp.sqrt(HID))

    # Random symmetrized edge_index, shape [2, 2*NUM_EDGES].
    edges = jax.random.randint(k_e, (2, NUM_EDGES), 0, N)
    edge_index = jnp.concatenate([edges, edges[::-1]], axis=1)

    a_hat = build_normalized_adjacency(edge_index, N)

    # One-time build-step preprocessing (hoisted out of the forward path).
    w1p, b1p, w2p, b2p, a_scaled, num_classes = build_appnp_params(
        w1, b1, w2, b2, a_hat)
    w1p, b1p, w2p, b2p, a_scaled = jax.block_until_ready(
        (w1p, b1p, w2p, b2p, a_scaled))

    out = appnp_net_forward(x, w1p, b1p, w2p, b2p, a_scaled,
                            num_classes=num_classes)
    out = jax.block_until_ready(out)
    assert out.shape == (N, C)

    # Check against a reference with identical numerics.
    ref_mirror = reference_forward_mirrored(x, w1, b1, w2, b2, a_hat)
    assert jnp.allclose(out, ref_mirror, atol=1e-2, rtol=1e-2), \
        "mismatch vs bf16-mirrored reference"

    # Semantics check: bf16 MXU operands stay within a small absolute error of
    # the exact f32 forward (A_hat entries are O(1), f32 accumulation and f32
    # elementwise throughout).
    ref_f32 = reference_forward_f32(x, w1, b1, w2, b2, a_hat)
    assert float(jnp.max(jnp.abs(out - ref_f32))) < 0.1, \
        "drifted from f32 reference"

    print("KERNEL_OK")
</pallas_src>

<mosaic_0001>
module attributes {stable_mosaic.version = 11 : i64} {
  func.func @appnp_kernel(%arg0: memref<128x16xf32, #tpu.memory_space<vmem>>, %arg1: memref<16x128xbf16, #tpu.memory_space<vmem>>, %arg2: memref<1x128xf32, #tpu.memory_space<vmem>>, %arg3: memref<128x128xbf16, #tpu.memory_space<vmem>>, %arg4: memref<1x128xf32, #tpu.memory_space<vmem>>, %arg5: memref<128x128xbf16, #tpu.memory_space<vmem>>, %arg6: memref<128x128xf32, #tpu.memory_space<vmem>>, %arg7: memref<128x128xf32, #tpu.memory_space<vmem>>) attributes {dimension_semantics = [], scalar_prefetch = 0 : i64, scratch_operands = 1 : i64, tpu.core_type = #tpu.core_type<tc>} {
    %c0 = arith.constant 0 : index
    %c0_0 = arith.constant 0 : index
    %0 = vector.load %arg0[%c0, %c0_0] : memref<128x16xf32, #tpu.memory_space<vmem>>, vector<128x16xf32>
    %1 = arith.truncf %0 : vector<128x16xf32> to vector<128x16xbf16>
    %c0_1 = arith.constant 0 : index
    %c0_2 = arith.constant 0 : index
    %2 = vector.load %arg1[%c0_1, %c0_2] : memref<16x128xbf16, #tpu.memory_space<vmem>>, vector<16x128xbf16>
    %cst = arith.constant dense<0.000000e+00> : vector<128x128xf32>
    %3 = tpu.matmul %1, %2, %cst {dimension_numbers = #tpu.dot_dimension_numbers<[1], [0], [0], [1], [0, 0, 1, 1], [], []>} : vector<128x16xbf16>, vector<16x128xbf16>, vector<128x128xf32> -> vector<128x128xf32>
    %c0_3 = arith.constant 0 : index
    %c0_4 = arith.constant 0 : index
    %4 = vector.load %arg2[%c0_3, %c0_4] : memref<1x128xf32, #tpu.memory_space<vmem>>, vector<1x128xf32>
    %5 = vector.broadcast %4 : vector<1x128xf32> to vector<128x128xf32>
    %6 = arith.addf %3, %5 : vector<128x128xf32>
    %cst_5 = arith.constant 0.000000e+00 : f32
    %7 = vector.broadcast %cst_5 : f32 to vector<128x128xf32>
    %8 = arith.maximumf %6, %7 : vector<128x128xf32>
    %9 = arith.truncf %8 : vector<128x128xf32> to vector<128x128xbf16>
    %c0_6 = arith.constant 0 : index
    %c0_7 = arith.constant 0 : index
    %10 = vector.load %arg3[%c0_6, %c0_7] : memref<128x128xbf16, #tpu.memory_space<vmem>>, vector<128x128xbf16>
    %cst_8 = arith.constant dense<0.000000e+00> : vector<128x128xf32>
    %11 = tpu.matmul %9, %10, %cst_8 {dimension_numbers = #tpu.dot_dimension_numbers<[1], [0], [0], [1], [0, 0, 1, 1], [], []>} : vector<128x128xbf16>, vector<128x128xbf16>, vector<128x128xf32> -> vector<128x128xf32>
    %c0_9 = arith.constant 0 : index
    %c0_10 = arith.constant 0 : index
    %12 = vector.load %arg4[%c0_9, %c0_10] : memref<1x128xf32, #tpu.memory_space<vmem>>, vector<1x128xf32>
    %13 = vector.broadcast %12 : vector<1x128xf32> to vector<128x128xf32>
    %14 = arith.addf %11, %13 : vector<128x128xf32>
    %cst_11 = arith.constant 1.000000e-01 : f32
    %15 = vector.broadcast %cst_11 : f32 to vector<128x128xf32>
    %16 = arith.mulf %15, %14 : vector<128x128xf32>
    %c0_12 = arith.constant 0 : index
    %c0_13 = arith.constant 0 : index
    %17 = vector.load %arg7[%c0_12, %c0_13] : memref<128x128xf32, #tpu.memory_space<vmem>>, vector<128x128xf32>
    tpu.vector_store %arg7[%c0_12, %c0_13], %16 {strides = array<i32>} : memref<128x128xf32, #tpu.memory_space<vmem>>, vector<128x128xf32>,
    %c0_14 = arith.constant 0 : index
    %c0_15 = arith.constant 0 : index
    %18 = vector.load %arg5[%c0_14, %c0_15] : memref<128x128xbf16, #tpu.memory_space<vmem>>, vector<128x128xbf16>
    %19 = arith.truncf %14 : vector<128x128xf32> to vector<128x128xbf16>
    %cst_16 = arith.constant dense<0.000000e+00> : vector<128x128xf32>
    %20 = tpu.matmul %18, %19, %cst_16 {dimension_numbers = #tpu.dot_dimension_numbers<[1], [0], [0], [1], [0, 0, 1, 1], [], []>} : vector<128x128xbf16>, vector<128x128xbf16>, vector<128x128xf32> -> vector<128x128xf32>
    %c0_17 = arith.constant 0 : index
    %c0_18 = arith.constant 0 : index
    %21 = vector.load %arg7[%c0_17, %c0_18] : memref<128x128xf32, #tpu.memory_space<vmem>>, vector<128x128xf32>
    %22 = arith.addf %20, %21 : vector<128x128xf32>
    %c0_19 = arith.constant 0 : index
    %c0_20 = arith.constant 0 : index
    %23 = vector.load %arg5[%c0_19, %c0_20] : memref<128x128xbf16, #tpu.memory_space<vmem>>, vector<128x128xbf16>
    %24 = arith.truncf %22 : vector<128x128xf32> to vector<128x128xbf16>
    %cst_21 = arith.constant dense<0.000000e+00> : vector<128x128xf32>
    %25 = tpu.matmul %23, %24, %cst_21 {dimension_numbers = #tpu.dot_dimension_numbers<[1], [0], [0], [1], [0, 0, 1, 1], [], []>} : vector<128x128xbf16>, vector<128x128xbf16>, vector<128x128xf32> -> vector<128x128xf32>
    %c0_22 = arith.constant 0 : index
    %c0_23 = arith.constant 0 : index
    %26 = vector.load %arg7[%c0_22, %c0_23] : memref<128x128xf32, #tpu.memory_space<vmem>>, vector<128x128xf32>
    %27 = arith.addf %25, %26 : vector<128x128xf32>
    %c0_24 = arith.constant 0 : index
    %c0_25 = arith.constant 0 : index
    %28 = vector.load %arg5[%c0_24, %c0_25] : memref<128x128xbf16, #tpu.memory_space<vmem>>, vector<128x128xbf16>
    %29 = arith.truncf %27 : vector<128x128xf32> to vector<128x128xbf16>
    %cst_26 = arith.constant dense<0.000000e+00> : vector<128x128xf32>
    %30 = tpu.matmul %28, %29, %cst_26 {dimension_numbers = #tpu.dot_dimension_numbers<[1], [0], [0], [1], [0, 0, 1, 1], [], []>} : vector<128x128xbf16>, vector<128x128xbf16>, vector<128x128xf32> -> vector<128x128xf32>
    %c0_27 = arith.constant 0 : index
    %c0_28 = arith.constant 0 : index
    %31 = vector.load %arg7[%c0_27, %c0_28] : memref<128x128xf32, #tpu.memory_space<vmem>>, vector<128x128xf32>
    %32 = arith.addf %30, %31 : vector<128x128xf32>
    %c0_29 = arith.constant 0 : index
    %c0_30 = arith.constant 0 : index
    %33 = vector.load %arg5[%c0_29, %c0_30] : memref<128x128xbf16, #tpu.memory_space<vmem>>, vector<128x128xbf16>
    %34 = arith.truncf %32 : vector<128x128xf32> to vector<128x128xbf16>
    %cst_31 = arith.constant dense<0.000000e+00> : vector<128x128xf32>
    %35 = tpu.matmul %33, %34, %cst_31 {dimension_numbers = #tpu.dot_dimension_numbers<[1], [0], [0], [1], [0, 0, 1, 1], [], []>} : vector<128x128xbf16>, vector<128x128xbf16>, vector<128x128xf32> -> vector<128x128xf32>
    %c0_32 = arith.constant 0 : index
    %c0_33 = arith.constant 0 : index
    %36 = vector.load %arg7[%c0_32, %c0_33] : memref<128x128xf32, #tpu.memory_space<vmem>>, vector<128x128xf32>
    %37 = arith.addf %35, %36 : vector<128x128xf32>
    %c0_34 = arith.constant 0 : index
    %c0_35 = arith.constant 0 : index
    %38 = vector.load %arg5[%c0_34, %c0_35] : memref<128x128xbf16, #tpu.memory_space<vmem>>, vector<128x128xbf16>
    %39 = arith.truncf %37 : vector<128x128xf32> to vector<128x128xbf16>
    %cst_36 = arith.constant dense<0.000000e+00> : vector<128x128xf32>
    %40 = tpu.matmul %38, %39, %cst_36 {dimension_numbers = #tpu.dot_dimension_numbers<[1], [0], [0], [1], [0, 0, 1, 1], [], []>} : vector<128x128xbf16>, vector<128x128xbf16>, vector<128x128xf32> -> vector<128x128xf32>
    %c0_37 = arith.constant 0 : index
    %c0_38 = arith.constant 0 : index
    %41 = vector.load %arg7[%c0_37, %c0_38] : memref<128x128xf32, #tpu.memory_space<vmem>>, vector<128x128xf32>
    %42 = arith.addf %40, %41 : vector<128x128xf32>
    %c0_39 = arith.constant 0 : index
    %c0_40 = arith.constant 0 : index
    %43 = vector.load %arg5[%c0_39, %c0_40] : memref<128x128xbf16, #tpu.memory_space<vmem>>, vector<128x128xbf16>
    %44 = arith.truncf %42 : vector<128x128xf32> to vector<128x128xbf16>
    %cst_41 = arith.constant dense<0.000000e+00> : vector<128x128xf32>
    %45 = tpu.matmul %43, %44, %cst_41 {dimension_numbers = #tpu.dot_dimension_numbers<[1], [0], [0], [1], [0, 0, 1, 1], [], []>} : vector<128x128xbf16>, vector<128x128xbf16>, vector<128x128xf32> -> vector<128x128xf32>
    %c0_42 = arith.constant 0 : index
    %c0_43 = arith.constant 0 : index
    %46 = vector.load %arg7[%c0_42, %c0_43] : memref<128x128xf32, #tpu.memory_space<vmem>>, vector<128x128xf32>
    %47 = arith.addf %45, %46 : vector<128x128xf32>
    %c0_44 = arith.constant 0 : index
    %c0_45 = arith.constant 0 : index
    %48 = vector.load %arg5[%c0_44, %c0_45] : memref<128x128xbf16, #tpu.memory_space<vmem>>, vector<128x128xbf16>
    %49 = arith.truncf %47 : vector<128x128xf32> to vector<128x128xbf16>
    %cst_46 = arith.constant dense<0.000000e+00> : vector<128x128xf32>
    %50 = tpu.matmul %48, %49, %cst_46 {dimension_numbers = #tpu.dot_dimension_numbers<[1], [0], [0], [1], [0, 0, 1, 1], [], []>} : vector<128x128xbf16>, vector<128x128xbf16>, vector<128x128xf32> -> vector<128x128xf32>
    %c0_47 = arith.constant 0 : index
    %c0_48 = arith.constant 0 : index
    %51 = vector.load %arg7[%c0_47, %c0_48] : memref<128x128xf32, #tpu.memory_space<vmem>>, vector<128x128xf32>
    %52 = arith.addf %50, %51 : vector<128x128xf32>
    %c0_49 = arith.constant 0 : index
    %c0_50 = arith.constant 0 : index
    %53 = vector.load %arg5[%c0_49, %c0_50] : memref<128x128xbf16, #tpu.memory_space<vmem>>, vector<128x128xbf16>
    %54 = arith.truncf %52 : vector<128x128xf32> to vector<128x128xbf16>
    %cst_51 = arith.constant dense<0.000000e+00> : vector<128x128xf32>
    %55 = tpu.matmul %53, %54, %cst_51 {dimension_numbers = #tpu.dot_dimension_numbers<[1], [0], [0], [1], [0, 0, 1, 1], [], []>} : vector<128x128xbf16>, vector<128x128xbf16>, vector<128x128xf32> -> vector<128x128xf32>
    %c0_52 = arith.constant 0 : index
    %c0_53 = arith.constant 0 : index
    %56 = vector.load %arg7[%c0_52, %c0_53] : memref<128x128xf32, #tpu.memory_space<vmem>>, vector<128x128xf32>
    %57 = arith.addf %55, %56 : vector<128x128xf32>
    %c0_54 = arith.constant 0 : index
    %c0_55 = arith.constant 0 : index
    %58 = vector.load %arg5[%c0_54, %c0_55] : memref<128x128xbf16, #tpu.memory_space<vmem>>, vector<128x128xbf16>
    %59 = arith.truncf %57 : vector<128x128xf32> to vector<128x128xbf16>
    %cst_56 = arith.constant dense<0.000000e+00> : vector<128x128xf32>
    %60 = tpu.matmul %58, %59, %cst_56 {dimension_numbers = #tpu.dot_dimension_numbers<[1], [0], [0], [1], [0, 0, 1, 1], [], []>} : vector<128x128xbf16>, vector<128x128xbf16>, vector<128x128xf32> -> vector<128x128xf32>
    %c0_57 = arith.constant 0 : index
    %c0_58 = arith.constant 0 : index
    %61 = vector.load %arg7[%c0_57, %c0_58] : memref<128x128xf32, #tpu.memory_space<vmem>>, vector<128x128xf32>
    %62 = arith.addf %60, %61 : vector<128x128xf32>
    %c0_59 = arith.constant 0 : index
    %c0_60 = arith.constant 0 : index
    %63 = vector.load %arg5[%c0_59, %c0_60] : memref<128x128xbf16, #tpu.memory_space<vmem>>, vector<128x128xbf16>
    %64 = arith.truncf %62 : vector<128x128xf32> to vector<128x128xbf16>
    %cst_61 = arith.constant dense<0.000000e+00> : vector<128x128xf32>
    %65 = tpu.matmul %63, %64, %cst_61 {dimension_numbers = #tpu.dot_dimension_numbers<[1], [0], [0], [1], [0, 0, 1, 1], [], []>} : vector<128x128xbf16>, vector<128x128xbf16>, vector<128x128xf32> -> vector<128x128xf32>
    %c0_62 = arith.constant 0 : index
    %c0_63 = arith.constant 0 : index
    %66 = vector.load %arg7[%c0_62, %c0_63] : memref<128x128xf32, #tpu.memory_space<vmem>>, vector<128x128xf32>
    %67 = arith.addf %65, %66 : vector<128x128xf32>
    %68 = tpu.iota {dimensions = array<i32: 1>} : vector<128x128xi32>
    %c8_i32 = arith.constant 8 : i32
    %69 = vector.broadcast %c8_i32 : i32 to vector<128x128xi32>
    %70 = arith.cmpi slt, %68, %69 : vector<128x128xi32>
    %cst_64 = arith.constant -1.000000e+30 : f32
    %71 = vector.broadcast %cst_64 : f32 to vector<128x128xf32>
    %72 = arith.select %70, %67, %71 : vector<128x128xi1>, vector<128x128xf32>
    %cst_65 = arith.constant dense<0xFF800000> : vector<128xf32>
    %73 = vector.multi_reduction <maximumf>, %72, %cst_65 [1] : vector<128x128xf32> to vector<128xf32>
    %74 = vector.shape_cast %73 : vector<128xf32> to vector<128x1xf32>
    %75 = vector.broadcast %74 : vector<128x1xf32> to vector<128x128xf32>
    %76 = arith.subf %72, %75 : vector<128x128xf32>
    %77 = math.exp %76 : vector<128x128xf32>
    %cst_66 = arith.constant 0.000000e+00 : f32
    %78 = vector.broadcast %cst_66 : f32 to vector<128x128xf32>
    %79 = arith.select %70, %77, %78 : vector<128x128xi1>, vector<128x128xf32>
    %cst_67 = arith.constant dense<0.000000e+00> : vector<128xf32>
    %80 = vector.multi_reduction <add>, %79, %cst_67 [1] : vector<128x128xf32> to vector<128xf32>
    %81 = vector.shape_cast %80 : vector<128xf32> to vector<128x1xf32>
    %82 = math.log %81 : vector<128x1xf32>
    %83 = vector.broadcast %82 : vector<128x1xf32> to vector<128x128xf32>
    %84 = arith.subf %76, %83 : vector<128x128xf32>
    %c0_68 = arith.constant 0 : index
    %c0_69 = arith.constant 0 : index
    %85 = vector.load %arg6[%c0_68, %c0_69] : memref<128x128xf32, #tpu.memory_space<vmem>>, vector<128x128xf32>
    tpu.vector_store %arg6[%c0_68, %c0_69], %84 {strides = array<i32>} : memref<128x128xf32, #tpu.memory_space<vmem>>, vector<128x128xf32>,
    return
  }
}

</mosaic_0001>

<llo_original>
// kernel: appnp_net_forward.1
$region0: #{appnp_net_forward.1}
  #allocation0 [shape = 'u32[]', space=smem, size = 0x4, offset = 0x4, fixed_abs, tag = 'smem constant byte address 0x4 - core index']
  #allocation1 [shape = 'u32[144,128]{1,0:T(1,128)}', space=vmem, size = 0x12000, scoped, tag = 'internal scratch']
  #allocation2 [shape = 'f32[128,128]{1,0:T(8,128)}', space=vmem, size = 0x10000, scoped, tag = 'scratch operand']
  %s0 = inlined_call_operand.vmem [shape: f32[128,16], index: 0, kind: input, shape index: {}]
  %s1 = inlined_call_operand.vmem [shape: bf16[16,128], index: 1, kind: input, shape index: {}]
  %s2 = inlined_call_operand.vmem [shape: f32[1,128], index: 2, kind: input, shape index: {}]
  %s3 = inlined_call_operand.vmem [shape: bf16[128,128], index: 3, kind: input, shape index: {}]
  %s4 = inlined_call_operand.vmem [shape: f32[1,128], index: 4, kind: input, shape index: {}]
  %s5 = inlined_call_operand.vmem [shape: bf16[128,128], index: 5, kind: input, shape index: {}]
  %s6 = inlined_call_operand.vmem [shape: f32[128,128], index: 6, kind: output, shape index: {}]
  %s7 = sld [smem:[#allocation0]]
  $region34: #{appnp_net_forward.1} parent=0
    _
  %s9 = ssub.s32 1, %s7
  %s10 = scalar_select 0, %s9, %s7
  // Predicated region
  $region2: #{appnp_net_forward.1} parent=0 // pred_check
    _
  $region3: #{appnp_net_forward.1} parent=0 // pred_check_branch
    %12 = sbr.rel (0) target = $region5
  $region4: #{appnp_net_forward.1} parent=0 // pred_region
    _
  $region5: #{appnp_net_forward.1} parent=0 // pred_fallthru
    _
  // Predicated region
  $region6: #{appnp_net_forward.1} parent=0 // pred_check
    _
  $region7: #{appnp_net_forward.1} parent=0 // pred_check_branch
    %14 = sbr.rel (0) target = $region9
  $region8: #{appnp_net_forward.1} parent=0 // pred_region
    _
  $region9: #{appnp_net_forward.1} parent=0 // pred_fallthru
    _
  // Predicated region
  $region10: #{appnp_net_forward.1} parent=0 // pred_check
    _
  $region11: #{appnp_net_forward.1} parent=0 // pred_check_branch
    %16 = sbr.rel (0) target = $region13
  $region12: #{appnp_net_forward.1} parent=0 // pred_region
    _
  $region13: #{appnp_net_forward.1} parent=0 // pred_fallthru
    _
  // Predicated region
  $region14: #{appnp_net_forward.1} parent=0 // pred_check
    _
  $region15: #{appnp_net_forward.1} parent=0 // pred_check_branch
    %18 = sbr.rel (0) target = $region17
  $region16: #{appnp_net_forward.1} parent=0 // pred_region
    _
  $region17: #{appnp_net_forward.1} parent=0 // pred_fallthru
    _
  // Predicated region
  $region18: #{appnp_net_forward.1} parent=0 // pred_check
    _
  $region19: #{appnp_net_forward.1} parent=0 // pred_check_branch
    %20 = sbr.rel (0) target = $region21
  $region20: #{appnp_net_forward.1} parent=0 // pred_region
    _
  $region21: #{appnp_net_forward.1} parent=0 // pred_fallthru
    _
  // Predicated region
  $region22: #{appnp_net_forward.1} parent=0 // pred_check
    _
  $region23: #{appnp_net_forward.1} parent=0 // pred_check_branch
    %22 = sbr.rel (0) target = $region25
  $region24: #{appnp_net_forward.1} parent=0 // pred_region
    _
  $region25: #{appnp_net_forward.1} parent=0 // pred_fallthru
    _
  %v24 = vld [vmem:[%s0] sm:$0xff]
  %v25 = vld [vmem:[%s0 + $0x8] sm:$0xff]
  %v26 = vld [vmem:[%s0 + $0x10] sm:$0xff]
  %v27 = vld [vmem:[%s0 + $0x18] sm:$0xff]
  %v28 = vld [vmem:[%s0 + $0x20] sm:$0xff]
  %v29 = vld [vmem:[%s0 + $0x28] sm:$0xff]
  %v30 = vld [vmem:[%s0 + $0x30] sm:$0xff]
  %v31 = vld [vmem:[%s0 + $0x38] sm:$0xff]
  %v32 = vld [vmem:[%s0 + $0x40] sm:$0xff]
  %v33 = vld [vmem:[%s0 + $0x48] sm:$0xff]
  %v34 = vld [vmem:[%s0 + $0x50] sm:$0xff]
  %v35 = vld [vmem:[%s0 + $0x58] sm:$0xff]
  %v36 = vld [vmem:[%s0 + $0x60] sm:$0xff]
  %v37 = vld [vmem:[%s0 + $0x68] sm:$0xff]
  %v38 = vld [vmem:[%s0 + $0x70] sm:$0xff]
  %v39 = vld [vmem:[%s0 + $0x78] sm:$0xff]
  %v40 = vpack.c.bf16 %v25, %v24
  %v41 = vpack.c.bf16 %v27, %v26
  %v42 = vpack.c.bf16 %v29, %v28
  %v43 = vpack.c.bf16 %v31, %v30
  %v44 = vpack.c.bf16 %v33, %v32
  %v45 = vpack.c.bf16 %v35, %v34
  %v46 = vpack.c.bf16 %v37, %v36
  %v47 = vpack.c.bf16 %v39, %v38
  %v48 = vld [vmem:[%s1] sm:$0xf]
  %v49 = vld [vmem:[%s1 + $0x4] sm:$0xf]
  %v50 = vld [vmem:[%s2] sm:$0x1]
  %v52 = vlaneseq
  %v53 = vshrl.u32 %v52, 7
  %v54 = vsub.s32 0, %v53
  %v55 = vrot.slane %v50, %v54
  %v59 = vunpack.c.l.b16 %v48
  %v60 = vunpack.c.l.b16 %v49
  %v61 = vpack.c.b16 %v60, %v59
  %vm63 = vcmask 130048
  %v65 = vsel %vm63, %v40, 0
  %v68 = vsel %vm63, %v41, 0
  %v71 = vsel %vm63, %v42, 0
  %v74 = vsel %vm63, %v43, 0
  %v77 = vsel %vm63, %v44, 0
  %v80 = vsel %vm63, %v45, 0
  %v83 = vsel %vm63, %v46, 0
  %v86 = vsel %vm63, %v47, 0
  %88 = vmatprep.subr.bf16.mxu0 0
  %89 = vmatpush1.bf16.msra.mxu0 %v61
  %90 = vmatprep.subr.bf16.mxu0 0
  %91 = vmatpush1.bf16.msra.mxu0 0
  %92 = vmatprep.subr.bf16.mxu0 0
  %93 = vmatpush1.bf16.msra.mxu0 0
  %94 = vmatprep.subr.bf16.mxu0 0
  %95 = vmatpush1.bf16.msra.mxu0 0
  %96 = vmatprep.subr.bf16.mxu0 0
  %97 = vmatpush1.bf16.msra.mxu0 0
  %98 = vmatprep.subr.bf16.mxu0 0
  %99 = vmatpush1.bf16.msra.mxu0 0
  %100 = vmatprep.subr.bf16.mxu0 0
  %101 = vmatpush1.bf16.msra.mxu0 0
  %102 = vmatprep.subr.bf16.mxu0 0
  %103 = vmatpush1.bf16.msra.mxu0 0
  %104 = vmatprep.subr.bf16.mxu0 0
  %105 = vmatpush1.bf16.msra.mxu0 0
  %106 = vmatprep.subr.bf16.mxu0 0
  %107 = vmatpush1.bf16.msra.mxu0 0
  %108 = vmatprep.subr.bf16.mxu0 0
  %109 = vmatpush1.bf16.msra.mxu0 0
  %110 = vmatprep.subr.bf16.mxu0 0
  %111 = vmatpush1.bf16.msra.mxu0 0
  %112 = vmatprep.subr.bf16.mxu0 0
  %113 = vmatpush1.bf16.msra.mxu0 0
  %114 = vmatprep.subr.bf16.mxu0 0
  %115 = vmatpush1.bf16.msra.mxu0 0
  %116 = vmatprep.subr.bf16.mxu0 0
  %117 = vmatpush1.bf16.msra.mxu0 0
  %118 = vmatprep.subr.bf16.mxu0 0
  %119 = vmatpush1.bf16.msra.mxu0 0
  %120 = vmatprep.mubr.bf16.mxu0 0
  %121 = vmatmul.mubr.bf16.gmra.mrb[0].mxu0 %v65
  %v122 = vpop.f32.mrb[0].mxu0
  %v123 = vadd.f32 %v55, %v122
  %v124 = vpop.f32.mrb[0].mxu0
  %v125 = vpop.f32.mrb[0].mxu0
  %v126 = vadd.f32 %v55, %v125
  %v127 = vpop.f32.mrb[0].mxu0
  %128 = vmatprep.mubr.bf16.mxu0 0
  %129 = vmatmul.mubr.bf16.gmra.mrb[0].mxu0 %v68
  %v130 = vpop.f32.mrb[0].mxu0
  %v131 = vadd.f32 %v55, %v130
  %v132 = vpop.f32.mrb[0].mxu0
  %v133 = vpop.f32.mrb[0].mxu0
  %v134 = vadd.f32 %v55, %v133
  %v135 = vpop.f32.mrb[0].mxu0
  %136 = vmatprep.mubr.bf16.mxu0 0
  %137 = vmatmul.mubr.bf16.gmra.mrb[0].mxu0 %v71
  %v138 = vpop.f32.mrb[0].mxu0
  %v139 = vadd.f32 %v55, %v138
  %v140 = vpop.f32.mrb[0].mxu0
  %v141 = vpop.f32.mrb[0].mxu0
  %v142 = vadd.f32 %v55, %v141
  %v143 = vpop.f32.mrb[0].mxu0
  %144 = vmatprep.mubr.bf16.mxu0 0
  %145 = vmatmul.mubr.bf16.gmra.mrb[0].mxu0 %v74
  %v146 = vpop.f32.mrb[0].mxu0
  %v147 = vadd.f32 %v55, %v146
  %v148 = vpop.f32.mrb[0].mxu0
  %v149 = vpop.f32.mrb[0].mxu0
  %v150 = vadd.f32 %v55, %v149
  %v151 = vpop.f32.mrb[0].mxu0
  %152 = vmatprep.mubr.bf16.mxu0 0
  %153 = vmatmul.mubr.bf16.gmra.mrb[0].mxu0 %v77
  %v154 = vpop.f32.mrb[0].mxu0
  %v155 = vadd.f32 %v55, %v154
  %v156 = vpop.f32.mrb[0].mxu0
  %v157 = vpop.f32.mrb[0].mxu0
  %v158 = vadd.f32 %v55, %v157
  %v159 = vpop.f32.mrb[0].mxu0
  %160 = vmatprep.mubr.bf16.mxu0 0
  %161 = vmatmul.mubr.bf16.gmra.mrb[0].mxu0 %v80
  %v162 = vpop.f32.mrb[0].mxu0
  %v163 = vadd.f32 %v55, %v162
  %v164 = vpop.f32.mrb[0].mxu0
  %v165 = vpop.f32.mrb[0].mxu0
  %v166 = vadd.f32 %v55, %v165
  %v167 = vpop.f32.mrb[0].mxu0
  %168 = vmatprep.mubr.bf16.mxu0 0
  %169 = vmatmul.mubr.bf16.gmra.mrb[0].mxu0 %v83
  %v170 = vpop.f32.mrb[0].mxu0
  %v171 = vadd.f32 %v55, %v170
  %v172 = vpop.f32.mrb[0].mxu0
  %v173 = vpop.f32.mrb[0].mxu0
  %v174 = vadd.f32 %v55, %v173
  %v175 = vpop.f32.mrb[0].mxu0
  %176 = vmatprep.mubr.bf16.mxu0 0
  %177 = vmatmul.mubr.bf16.gmra.mrb[0].mxu0 %v86
  %v178 = vpop.f32.mrb[0].mxu0
  %v179 = vadd.f32 %v55, %v178
  %v180 = vpop.f32.mrb[0].mxu0
  %v181 = vpop.f32.mrb[0].mxu0
  %v182 = vadd.f32 %v55, %v181
  %v183 = vpop.f32.mrb[0].mxu0
  %184 = vdwg.mxu0
  %v185 = vmax.f32 %v123, 0.0
  %v186 = vmax.f32 %v126, 0.0
  %v187 = vmax.f32 %v131, 0.0
  %v188 = vmax.f32 %v134, 0.0
  %v189 = vmax.f32 %v139, 0.0
  %v190 = vmax.f32 %v142, 0.0
  %v191 = vmax.f32 %v147, 0.0
  %v192 = vmax.f32 %v150, 0.0
  %v193 = vmax.f32 %v155, 0.0
  %v194 = vmax.f32 %v158, 0.0
  %v195 = vmax.f32 %v163, 0.0
  %v196 = vmax.f32 %v166, 0.0
  %v197 = vmax.f32 %v171, 0.0
  %v198 = vmax.f32 %v174, 0.0
  %v199 = vmax.f32 %v179, 0.0
  %v200 = vmax.f32 %v182, 0.0
  %v201 = vpack.c.bf16 %v186, %v185
  %v202 = vpack.c.bf16 %v188, %v187
  %v203 = vpack.c.bf16 %v190, %v189
  %v204 = vpack.c.bf16 %v192, %v191
  %v205 = vpack.c.bf16 %v194, %v193
  %v206 = vpack.c.bf16 %v196, %v195
  %v207 = vpack.c.bf16 %v198, %v197
  %v208 = vpack.c.bf16 %v200, %v199
  %v209 = vld [vmem:[%s3] sm:$0xf]
  %v210 = vld [vmem:[%s3 + $0x4] sm:$0xf]
  %v211 = vld [vmem:[%s3 + $0x8] sm:$0xf]
  %v212 = vld [vmem:[%s3 + $0xc] sm:$0xf]
  %v213 = vld [vmem:[%s3 + $0x10] sm:$0xf]
  %v214 = vld [vmem:[%s3 + $0x14] sm:$0xf]
  %v215 = vld [vmem:[%s3 + $0x18] sm:$0xf]
  %v216 = vld [vmem:[%s3 + $0x1c] sm:$0xf]
  %v217 = vld [vmem:[%s3 + $0x20] sm:$0xf]
  %v218 = vld [vmem:[%s3 + $0x24] sm:$0xf]
  %v219 = vld [vmem:[%s3 + $0x28] sm:$0xf]
  %v220 = vld [vmem:[%s3 + $0x2c] sm:$0xf]
  %v221 = vld [vmem:[%s3 + $0x30] sm:$0xf]
  %v222 = vld [vmem:[%s3 + $0x34] sm:$0xf]
  %v223 = vld [vmem:[%s3 + $0x38] sm:$0xf]
  %v224 = vld [vmem:[%s3 + $0x3c] sm:$0xf]
  %v225 = vld [vmem:[%s4] sm:$0x1]
  %v227 = vlaneseq
  %v228 = vshrl.u32 %v227, 7
  %v229 = vsub.s32 0, %v228
  %v230 = vrot.slane %v225, %v229
  %v248 = vunpack.c.l.b16 %v209
  %v249 = vunpack.c.l.b16 %v210
  %v250 = vunpack.c.l.b16 %v211
  %v251 = vunpack.c.l.b16 %v212
  %v252 = vunpack.c.l.b16 %v213
  %v253 = vunpack.c.l.b16 %v214
  %v254 = vunpack.c.l.b16 %v215
  %v255 = vunpack.c.l.b16 %v216
  %v256 = vunpack.c.l.b16 %v217
  %v257 = vunpack.c.l.b16 %v218
  %v258 = vunpack.c.l.b16 %v219
  %v259 = vunpack.c.l.b16 %v220
  %v260 = vunpack.c.l.b16 %v221
  %v261 = vunpack.c.l.b16 %v222
  %v262 = vunpack.c.l.b16 %v223
  %v263 = vunpack.c.l.b16 %v224
  %v264 = vpack.c.b16 %v249, %v248
  %v265 = vpack.c.b16 %v251, %v250
  %v266 = vpack.c.b16 %v253, %v252
  %v267 = vpack.c.b16 %v255, %v254
  %v268 = vpack.c.b16 %v257, %v256
  %v269 = vpack.c.b16 %v259, %v258
  %v270 = vpack.c.b16 %v261, %v260
  %v271 = vpack.c.b16 %v263, %v262
  %280 = vmatprep.subr.bf16.mxu0 0
  %281 = vmatpush1.bf16.msra.mxu0 %v264
  %282 = vmatprep.subr.bf16.mxu0 0
  %283 = vmatpush1.bf16.msra.mxu0 %v265
  %284 = vmatprep.subr.bf16.mxu0 0
  %285 = vmatpush1.bf16.msra.mxu0 %v266
  %286 = vmatprep.subr.bf16.mxu0 0
  %287 = vmatpush1.bf16.msra.mxu0 %v267
  %288 = vmatprep.subr.bf16.mxu0 0
  %289 = vmatpush1.bf16.msra.mxu0 %v268
  %290 = vmatprep.subr.bf16.mxu0 0
  %291 = vmatpush1.bf16.msra.mxu0 %v269
  %292 = vmatprep.subr.bf16.mxu0 0
  %293 = vmatpush1.bf16.msra.mxu0 %v270
  %294 = vmatprep.subr.bf16.mxu0 0
  %295 = vmatpush1.bf16.msra.mxu0 %v271
  %296 = vmatprep.subr.bf16.mxu0 0
  %297 = vmatpush1.bf16.msra.mxu0 0
  %298 = vmatprep.subr.bf16.mxu0 0
  %299 = vmatpush1.bf16.msra.mxu0 0
  %300 = vmatprep.subr.bf16.mxu0 0
  %301 = vmatpush1.bf16.msra.mxu0 0
  %302 = vmatprep.subr.bf16.mxu0 0
  %303 = vmatpush1.bf16.msra.mxu0 0
  %304 = vmatprep.subr.bf16.mxu0 0
  %305 = vmatpush1.bf16.msra.mxu0 0
  %306 = vmatprep.subr.bf16.mxu0 0
  %307 = vmatpush1.bf16.msra.mxu0 0
  %308 = vmatprep.subr.bf16.mxu0 0
  %309 = vmatpush1.bf16.msra.mxu0 0
  %310 = vmatprep.subr.bf16.mxu0 0
  %311 = vmatpush1.bf16.msra.mxu0 0
  %312 = vmatprep.mubr.bf16.mxu0 0
  %313 = vmatmul.mubr.bf16.gmra.mrb[0].mxu0 %v201
  %v314 = vpop.f32.mrb[0].mxu0
  %v315 = vadd.f32 %v230, %v314
  %v316 = vpop.f32.mrb[0].mxu0
  %v317 = vpop.f32.mrb[0].mxu0
  %v318 = vadd.f32 %v230, %v317
  %v319 = vpop.f32.mrb[0].mxu0
  %320 = vmatprep.mubr.bf16.mxu0 0
  %321 = vmatmul.mubr.bf16.gmra.mrb[0].mxu0 %v202
  %v322 = vpop.f32.mrb[0].mxu0
  %v323 = vadd.f32 %v230, %v322
  %v324 = vpop.f32.mrb[0].mxu0
  %v325 = vpop.f32.mrb[0].mxu0
  %v326 = vadd.f32 %v230, %v325
  %v327 = vpop.f32.mrb[0].mxu0
  %328 = vmatprep.mubr.bf16.mxu0 0
  %329 = vmatmul.mubr.bf16.gmra.mrb[0].mxu0 %v203
  %v330 = vpop.f32.mrb[0].mxu0
  %v331 = vadd.f32 %v230, %v330
  %v332 = vpop.f32.mrb[0].mxu0
  %v333 = vpop.f32.mrb[0].mxu0
  %v334 = vadd.f32 %v230, %v333
  %v335 = vpop.f32.mrb[0].mxu0
  %336 = vmatprep.mubr.bf16.mxu0 0
  %337 = vmatmul.mubr.bf16.gmra.mrb[0].mxu0 %v204
  %v338 = vpop.f32.mrb[0].mxu0
  %v339 = vadd.f32 %v230, %v338
  %v340 = vpop.f32.mrb[0].mxu0
  %v341 = vpop.f32.mrb[0].mxu0
  %v342 = vadd.f32 %v230, %v341
  %v343 = vpop.f32.mrb[0].mxu0
  %344 = vmatprep.mubr.bf16.mxu0 0
  %345 = vmatmul.mubr.bf16.gmra.mrb[0].mxu0 %v205
  %v346 = vpop.f32.mrb[0].mxu0
  %v347 = vadd.f32 %v230, %v346
  %v348 = vpop.f32.mrb[0].mxu0
  %v349 = vpop.f32.mrb[0].mxu0
  %v350 = vadd.f32 %v230, %v349
  %v351 = vpop.f32.mrb[0].mxu0
  %352 = vmatprep.mubr.bf16.mxu0 0
  %353 = vmatmul.mubr.bf16.gmra.mrb[0].mxu0 %v206
  %v354 = vpop.f32.mrb[0].mxu0
  %v355 = vadd.f32 %v230, %v354
  %v356 = vpop.f32.mrb[0].mxu0
  %v357 = vpop.f32.mrb[0].mxu0
  %v358 = vadd.f32 %v230, %v357
  %v359 = vpop.f32.mrb[0].mxu0
  %360 = vmatprep.mubr.bf16.mxu0 0
  %361 = vmatmul.mubr.bf16.gmra.mrb[0].mxu0 %v207
  %v362 = vpop.f32.mrb[0].mxu0
  %v363 = vadd.f32 %v230, %v362
  %v364 = vpop.f32.mrb[0].mxu0
  %v365 = vpop.f32.mrb[0].mxu0
  %v366 = vadd.f32 %v230, %v365
  %v367 = vpop.f32.mrb[0].mxu0
  %368 = vmatprep.mubr.bf16.mxu0 0
  %369 = vmatmul.mubr.bf16.gmra.mrb[0].mxu0 %v208
  %v370 = vpop.f32.mrb[0].mxu0
  %v371 = vadd.f32 %v230, %v370
  %v372 = vpop.f32.mrb[0].mxu0
  %v373 = vpop.f32.mrb[0].mxu0
  %v374 = vadd.f32 %v230, %v373
  %v375 = vpop.f32.mrb[0].mxu0
  %376 = vdwg.mxu0
  %v377 = vmul.f32 %v315, 0.1
  %v378 = vmul.f32 %v318, 0.1
  %v379 = vmul.f32 %v323, 0.1
  %v380 = vmul.f32 %v326, 0.1
  %v381 = vmul.f32 %v331, 0.1
  %v382 = vmul.f32 %v334, 0.1
  %v383 = vmul.f32 %v339, 0.1
  %v384 = vmul.f32 %v342, 0.1
  %v385 = vmul.f32 %v347, 0.1
  %v386 = vmul.f32 %v350, 0.1
  %v387 = vmul.f32 %v355, 0.1
  %v388 = vmul.f32 %v358, 0.1
  %v389 = vmul.f32 %v363, 0.1
  %v390 = vmul.f32 %v366, 0.1
  %v391 = vmul.f32 %v371, 0.1
  %v392 = vmul.f32 %v374, 0.1
  %393 = vst [vmem:[#allocation2] sm:$0xff] %v377
  %394 = vst [vmem:[#allocation2 + $0x8] sm:$0xff] %v378
  %395 = vst [vmem:[#allocation2 + $0x10] sm:$0xff] %v379
  %396 = vst [vmem:[#allocation2 + $0x18] sm:$0xff] %v380
  %397 = vst [vmem:[#allocation2 + $0x20] sm:$0xff] %v381
  %398 = vst [vmem:[#allocation2 + $0x28] sm:$0xff] %v382
  %399 = vst [vmem:[#allocation2 + $0x30] sm:$0xff] %v383
  %400 = vst [vmem:[#allocation2 + $0x38] sm:$0xff] %v384
  %401 = vst [vmem:[#allocation2 + $0x40] sm:$0xff] %v385
  %402 = vst [vmem:[#allocation2 + $0x48] sm:$0xff] %v386
  %403 = vst [vmem:[#allocation2 + $0x50] sm:$0xff] %v387
  %404 = vst [vmem:[#allocation2 + $0x58] sm:$0xff] %v388
  %405 = vst [vmem:[#allocation2 + $0x60] sm:$0xff] %v389
  %406 = vst [vmem:[#allocation2 + $0x68] sm:$0xff] %v390
  %407 = vst [vmem:[#allocation2 + $0x70] sm:$0xff] %v391
  %408 = vst [vmem:[#allocation2 + $0x78] sm:$0xff] %v392
  %v409 = vld [vmem:[%s5] sm:$0xf]
  %v410 = vld [vmem:[%s5 + $0x4] sm:$0xf]
  %v411 = vld [vmem:[%s5 + $0x8] sm:$0xf]
  %v412 = vld [vmem:[%s5 + $0xc] sm:$0xf]
  %v413 = vld [vmem:[%s5 + $0x10] sm:$0xf]
  %v414 = vld [vmem:[%s5 + $0x14] sm:$0xf]
  %v415 = vld [vmem:[%s5 + $0x18] sm:$0xf]
  %v416 = vld [vmem:[%s5 + $0x1c] sm:$0xf]
  %v417 = vld [vmem:[%s5 + $0x20] sm:$0xf]
  %v418 = vld [vmem:[%s5 + $0x24] sm:$0xf]
  %v419 = vld [vmem:[%s5 + $0x28] sm:$0xf]
  %v420 = vld [vmem:[%s5 + $0x2c] sm:$0xf]
  %v421 = vld [vmem:[%s5 + $0x30] sm:$0xf]
  %v422 = vld [vmem:[%s5 + $0x34] sm:$0xf]
  %v423 = vld [vmem:[%s5 + $0x38] sm:$0xf]
  %v424 = vld [vmem:[%s5 + $0x3c] sm:$0xf]
  %v425 = vpack.c.bf16 %v318, %v315
  %v426 = vpack.c.bf16 %v326, %v323
  %v427 = vpack.c.bf16 %v334, %v331
  %v428 = vpack.c.bf16 %v342, %v339
  %v429 = vpack.c.bf16 %v350, %v347
  %v430 = vpack.c.bf16 %v358, %v355
  %v431 = vpack.c.bf16 %v366, %v363
  %v432 = vpack.c.bf16 %v374, %v371
  %v433 = vld [vmem:[#allocation2] sm:$0xff]
  %v434 = vld [vmem:[#allocation2 + $0x8] sm:$0xff]
  %v435 = vld [vmem:[#allocation2 + $0x10] sm:$0xff]
  %v436 = vld [vmem:[#allocation2 + $0x18] sm:$0xff]
  %v437 = vld [vmem:[#allocation2 + $0x20] sm:$0xff]
  %v438 = vld [vmem:[#allocation2 + $0x28] sm:$0xff]
  %v439 = vld [vmem:[#allocation2 + $0x30] sm:$0xff]
  %v440 = vld [vmem:[#allocation2 + $0x38] sm:$0xff]
  %v441 = vld [vmem:[#allocation2 + $0x40] sm:$0xff]
  %v442 = vld [vmem:[#allocation2 + $0x48] sm:$0xff]
  %v443 = vld [vmem:[#allocation2 + $0x50] sm:$0xff]
  %v444 = vld [vmem:[#allocation2 + $0x58] sm:$0xff]
  %v445 = vld [vmem:[#allocation2 + $0x60] sm:$0xff]
  %v446 = vld [vmem:[#allocation2 + $0x68] sm:$0xff]
  %v447 = vld [vmem:[#allocation2 + $0x70] sm:$0xff]
  %v448 = vld [vmem:[#allocation2 + $0x78] sm:$0xff]
  %v465 = vunpack.c.l.b16 %v409
  %v466 = vunpack.c.l.b16 %v410
  %v467 = vunpack.c.l.b16 %v411
  %v468 = vunpack.c.l.b16 %v412
  %v469 = vunpack.c.l.b16 %v413
  %v470 = vunpack.c.l.b16 %v414
  %v471 = vunpack.c.l.b16 %v415
  %v472 = vunpack.c.l.b16 %v416
  %v473 = vunpack.c.l.b16 %v417
  %v474 = vunpack.c.l.b16 %v418
  %v475 = vunpack.c.l.b16 %v419
  %v476 = vunpack.c.l.b16 %v420
  %v477 = vunpack.c.l.b16 %v421
  %v478 = vunpack.c.l.b16 %v422
  %v479 = vunpack.c.l.b16 %v423
  %v480 = vunpack.c.l.b16 %v424
  %v481 = vpack.c.b16 %v466, %v465
  %v482 = vpack.c.b16 %v468, %v467
  %v483 = vpack.c.b16 %v470, %v469
  %v484 = vpack.c.b16 %v472, %v471
  %v485 = vpack.c.b16 %v474, %v473
  %v486 = vpack.c.b16 %v476, %v475
  %v487 = vpack.c.b16 %v478, %v477
  %v488 = vpack.c.b16 %v480, %v479
  %497 = vmatprep.subr.bf16.mxu0 0
  %498 = vmatpush1.bf16.msra.mxu0 %v425
  %499 = vmatprep.subr.bf16.mxu0 0
  %500 = vmatpush1.bf16.msra.mxu0 %v426
  %501 = vmatprep.subr.bf16.mxu0 0
  %502 = vmatpush1.bf16.msra.mxu0 %v427
  %503 = vmatprep.subr.bf16.mxu0 0
  %504 = vmatpush1.bf16.msra.mxu0 %v428
  %505 = vmatprep.subr.bf16.mxu0 0
  %506 = vmatpush1.bf16.msra.mxu0 %v429
  %507 = vmatprep.subr.bf16.mxu0 0
  %508 = vmatpush1.bf16.msra.mxu0 %v430
  %509 = vmatprep.subr.bf16.mxu0 0
  %510 = vmatpush1.bf16.msra.mxu0 %v431
  %511 = vmatprep.subr.bf16.mxu0 0
  %512 = vmatpush1.bf16.msra.mxu0 %v432
  %513 = vmatprep.subr.bf16.mxu0 0
  %514 = vmatpush1.bf16.msra.mxu0 0
  %515 = vmatprep.subr.bf16.mxu0 0
  %516 = vmatpush1.bf16.msra.mxu0 0
  %517 = vmatprep.subr.bf16.mxu0 0
  %518 = vmatpush1.bf16.msra.mxu0 0
  %519 = vmatprep.subr.bf16.mxu0 0
  %520 = vmatpush1.bf16.msra.mxu0 0
  %521 = vmatprep.subr.bf16.mxu0 0
  %522 = vmatpush1.bf16.msra.mxu0 0
  %523 = vmatprep.subr.bf16.mxu0 0
  %524 = vmatpush1.bf16.msra.mxu0 0
  %525 = vmatprep.subr.bf16.mxu0 0
  %526 = vmatpush1.bf16.msra.mxu0 0
  %527 = vmatprep.subr.bf16.mxu0 0
  %528 = vmatpush1.bf16.msra.mxu0 0
  %529 = vmatprep.mubr.bf16.mxu0 0
  %530 = vmatmul.mubr.bf16.gmra.mrb[0].mxu0 %v481
  %v531 = vpop.f32.mrb[0].mxu0
  %v532 = vadd.f32 %v433, %v531
  %v533 = vpop.f32.mrb[0].mxu0
  %v534 = vpop.f32.mrb[0].mxu0
  %v535 = vadd.f32 %v434, %v534
  %v536 = vpop.f32.mrb[0].mxu0
  %537 = vmatprep.mubr.bf16.mxu0 0
  %538 = vmatmul.mubr.bf16.gmra.mrb[0].mxu0 %v482
  %v539 = vpop.f32.mrb[0].mxu0
  %v540 = vadd.f32 %v435, %v539
  %v541 = vpop.f32.mrb[0].mxu0
  %v542 = vpop.f32.mrb[0].mxu0
  %v543 = vadd.f32 %v436, %v542
  %v544 = vpop.f32.mrb[0].mxu0
  %545 = vmatprep.mubr.bf16.mxu0 0
  %546 = vmatmul.mubr.bf16.gmra.mrb[0].mxu0 %v483
  %v547 = vpop.f32.mrb[0].mxu0
  %v548 = vadd.f32 %v437, %v547
  %v549 = vpop.f32.mrb[0].mxu0
  %v550 = vpop.f32.mrb[0].mxu0
  %v551 = vadd.f32 %v438, %v550
  %v552 = vpop.f32.mrb[0].mxu0
  %553 = vmatprep.mubr.bf16.mxu0 0
  %554 = vmatmul.mubr.bf16.gmra.mrb[0].mxu0 %v484
  %v555 = vpop.f32.mrb[0].mxu0
  %v556 = vadd.f32 %v439, %v555
  %v557 = vpop.f32.mrb[0].mxu0
  %v558 = vpop.f32.mrb[0].mxu0
  %v559 = vadd.f32 %v440, %v558
  %v560 = vpop.f32.mrb[0].mxu0
  %561 = vmatprep.mubr.bf16.mxu0 0
  %562 = vmatmul.mubr.bf16.gmra.mrb[0].mxu0 %v485
  %v563 = vpop.f32.mrb[0].mxu0
  %v564 = vadd.f32 %v441, %v563
  %v565 = vpop.f32.mrb[0].mxu0
  %v566 = vpop.f32.mrb[0].mxu0
  %v567 = vadd.f32 %v442, %v566
  %v568 = vpop.f32.mrb[0].mxu0
  %569 = vmatprep.mubr.bf16.mxu0 0
  %570 = vmatmul.mubr.bf16.gmra.mrb[0].mxu0 %v486
  %v571 = vpop.f32.mrb[0].mxu0
  %v572 = vadd.f32 %v443, %v571
  %v573 = vpop.f32.mrb[0].mxu0
  %v574 = vpop.f32.mrb[0].mxu0
  %v575 = vadd.f32 %v444, %v574
  %v576 = vpop.f32.mrb[0].mxu0
  %577 = vmatprep.mubr.bf16.mxu0 0
  %578 = vmatmul.mubr.bf16.gmra.mrb[0].mxu0 %v487
  %v579 = vpop.f32.mrb[0].mxu0
  %v580 = vadd.f32 %v445, %v579
  %v581 = vpop.f32.mrb[0].mxu0
  %v582 = vpop.f32.mrb[0].mxu0
  %v583 = vadd.f32 %v446, %v582
  %v584 = vpop.f32.mrb[0].mxu0
  %585 = vmatprep.mubr.bf16.mxu0 0
  %586 = vmatmul.mubr.bf16.gmra.mrb[0].mxu0 %v488
  %v587 = vpop.f32.mrb[0].mxu0
  %v588 = vadd.f32 %v447, %v587
  %v589 = vpop.f32.mrb[0].mxu0
  %v590 = vpop.f32.mrb[0].mxu0
  %v591 = vadd.f32 %v448, %v590
  %v592 = vpop.f32.mrb[0].mxu0
  %593 = vdwg.mxu0
  %v594 = vpack.c.bf16 %v535, %v532
  %v595 = vpack.c.bf16 %v543, %v540
  %v596 = vpack.c.bf16 %v551, %v548
  %v597 = vpack.c.bf16 %v559, %v556
  %v598 = vpack.c.bf16 %v567, %v564
  %v599 = vpack.c.bf16 %v575, %v572
  %v600 = vpack.c.bf16 %v583, %v580
  %v601 = vpack.c.bf16 %v591, %v588
  %602 = vmatprep.subr.bf16.mxu0 0
  %603 = vmatpush1.bf16.msra.mxu0 %v594
  %604 = vmatprep.subr.bf16.mxu0 0
  %605 = vmatpush1.bf16.msra.mxu0 %v595
  %606 = vmatprep.subr.bf16.mxu0 0
  %607 = vmatpush1.bf16.msra.mxu0 %v596
  %608 = vmatprep.subr.bf16.mxu0 0
  %609 = vmatpush1.bf16.msra.mxu0 %v597
  %610 = vmatprep.subr.bf16.mxu0 0
  %611 = vmatpush1.bf16.msra.mxu0 %v598
  %612 = vmatprep.subr.bf16.mxu0 0
  %613 = vmatpush1.bf16.msra.mxu0 %v599
  %614 = vmatprep.subr.bf16.mxu0 0
  %615 = vmatpush1.bf16.msra.mxu0 %v600
  %616 = vmatprep.subr.bf16.mxu0 0
  %617 = vmatpush1.bf16.msra.mxu0 %v601
  %618 = vmatprep.subr.bf16.mxu0 0
  %619 = vmatpush1.bf16.msra.mxu0 0
  %620 = vmatprep.subr.bf16.mxu0 0
  %621 = vmatpush1.bf16.msra.mxu0 0
  %622 = vmatprep.subr.bf16.mxu0 0
  %623 = vmatpush1.bf16.msra.mxu0 0
  %624 = vmatprep.subr.bf16.mxu0 0
  %625 = vmatpush1.bf16.msra.mxu0 0
  %626 = vmatprep.subr.bf16.mxu0 0
  %627 = vmatpush1.bf16.msra.mxu0 0
  %628 = vmatprep.subr.bf16.mxu0 0
  %629 = vmatpush1.bf16.msra.mxu0 0
  %630 = vmatprep.subr.bf16.mxu0 0
  %631 = vmatpush1.bf16.msra.mxu0 0
  %632 = vmatprep.subr.bf16.mxu0 0
  %633 = vmatpush1.bf16.msra.mxu0 0
  %634 = vmatprep.mubr.bf16.mxu0 0
  %635 = vmatmul.mubr.bf16.gmra.mrb[0].mxu0 %v481
  %v636 = vpop.f32.mrb[0].mxu0
  %v637 = vadd.f32 %v433, %v636
  %v638 = vpop.f32.mrb[0].mxu0
  %v639 = vpop.f32.mrb[0].mxu0
  %v640 = vadd.f32 %v434, %v639
  %v641 = vpop.f32.mrb[0].mxu0
  %642 = vmatprep.mubr.bf16.mxu0 0
  %643 = vmatmul.mubr.bf16.gmra.mrb[0].mxu0 %v482
  %v644 = vpop.f32.mrb[0].mxu0
  %v645 = vadd.f32 %v435, %v644
  %v646 = vpop.f32.mrb[0].mxu0
  %v647 = vpop.f32.mrb[0].mxu0
  %v648 = vadd.f32 %v436, %v647
  %v649 = vpop.f32.mrb[0].mxu0
  %650 = vmatprep.mubr.bf16.mxu0 0
  %651 = vmatmul.mubr.bf16.gmra.mrb[0].mxu0 %v483
  %v652 = vpop.f32.mrb[0].mxu0
  %v653 = vadd.f32 %v437, %v652
  %v654 = vpop.f32.mrb[0].mxu0
  %v655 = vpop.f32.mrb[0].mxu0
  %v656 = vadd.f32 %v438, %v655
  %v657 = vpop.f32.mrb[0].mxu0
  %658 = vmatprep.mubr.bf16.mxu0 0
  %659 = vmatmul.mubr.bf16.gmra.mrb[0].mxu0 %v484
  %v660 = vpop.f32.mrb[0].mxu0
  %v661 = vadd.f32 %v439, %v660
  %v662 = vpop.f32.mrb[0].mxu0
  %v663 = vpop.f32.mrb[0].mxu0
  %v664 = vadd.f32 %v440, %v663
  %v665 = vpop.f32.mrb[0].mxu0
  %666 = vmatprep.mubr.bf16.mxu0 0
  %667 = vmatmul.mubr.bf16.gmra.mrb[0].mxu0 %v485
  %v668 = vpop.f32.mrb[0].mxu0
  %v669 = vadd.f32 %v441, %v668
  %v670 = vpop.f32.mrb[0].mxu0
  %v671 = vpop.f32.mrb[0].mxu0
  %v672 = vadd.f32 %v442, %v671
  %v673 = vpop.f32.mrb[0].mxu0
  %674 = vmatprep.mubr.bf16.mxu0 0
  %675 = vmatmul.mubr.bf16.gmra.mrb[0].mxu0 %v486
  %v676 = vpop.f32.mrb[0].mxu0
  %v677 = vadd.f32 %v443, %v676
  %v678 = vpop.f32.mrb[0].mxu0
  %v679 = vpop.f32.mrb[0].mxu0
  %v680 = vadd.f32 %v444, %v679
  %v681 = vpop.f32.mrb[0].mxu0
  %682 = vmatprep.mubr.bf16.mxu0 0
  %683 = vmatmul.mubr.bf16.gmra.mrb[0].mxu0 %v487
  %v684 = vpop.f32.mrb[0].mxu0
  %v685 = vadd.f32 %v445, %v684
  %v686 = vpop.f32.mrb[0].mxu0
  %v687 = vpop.f32.mrb[0].mxu0
  %v688 = vadd.f32 %v446, %v687
  %v689 = vpop.f32.mrb[0].mxu0
  %690 = vmatprep.mubr.bf16.mxu0 0
  %691 = vmatmul.mubr.bf16.gmra.mrb[0].mxu0 %v488
  %v692 = vpop.f32.mrb[0].mxu0
  %v693 = vadd.f32 %v447, %v692
  %v694 = vpop.f32.mrb[0].mxu0
  %v695 = vpop.f32.mrb[0].mxu0
  %v696 = vadd.f32 %v448, %v695
  %v697 = vpop.f32.mrb[0].mxu0
  %698 = vdwg.mxu0
  %v699 = vpack.c.bf16 %v640, %v637
  %v700 = vpack.c.bf16 %v648, %v645
  %v701 = vpack.c.bf16 %v656, %v653
  %v702 = vpack.c.bf16 %v664, %v661
  %v703 = vpack.c.bf16 %v672, %v669
  %v704 = vpack.c.bf16 %v680, %v677
  %v705 = vpack.c.bf16 %v688, %v685
  %v706 = vpack.c.bf16 %v696, %v693
  %707 = vmatprep.subr.bf16.mxu0 0
  %708 = vmatpush1.bf16.msra.mxu0 %v699
  %709 = vmatprep.subr.bf16.mxu0 0
  %710 = vmatpush1.bf16.msra.mxu0 %v700
  %711 = vmatprep.subr.bf16.mxu0 0
  %712 = vmatpush1.bf16.msra.mxu0 %v701
  %713 = vmatprep.subr.bf16.mxu0 0
  %714 = vmatpush1.bf16.msra.mxu0 %v702
  %715 = vmatprep.subr.bf16.mxu0 0
  %716 = vmatpush1.bf16.msra.mxu0 %v703
  %717 = vmatprep.subr.bf16.mxu0 0
  %718 = vmatpush1.bf16.msra.mxu0 %v704
  %719 = vmatprep.subr.bf16.mxu0 0
  %720 = vmatpush1.bf16.msra.mxu0 %v705
  %721 = vmatprep.subr.bf16.mxu0 0
  %722 = vmatpush1.bf16.msra.mxu0 %v706
  %723 = vmatprep.subr.bf16.mxu0 0
  %724 = vmatpush1.bf16.msra.mxu0 0
  %725 = vmatprep.subr.bf16.mxu0 0
  %726 = vmatpush1.bf16.msra.mxu0 0
  %727 = vmatprep.subr.bf16.mxu0 0
  %728 = vmatpush1.bf16.msra.mxu0 0
  %729 = vmatprep.subr.bf16.mxu0 0
  %730 = vmatpush1.bf16.msra.mxu0 0
  %731 = vmatprep.subr.bf16.mxu0 0
  %732 = vmatpush1.bf16.msra.mxu0 0
  %733 = vmatprep.subr.bf16.mxu0 0
  %734 = vmatpush1.bf16.msra.mxu0 0
  %735 = vmatprep.subr.bf16.mxu0 0
  %736 = vmatpush1.bf16.msra.mxu0 0
  %737 = vmatprep.subr.bf16.mxu0 0
  %738 = vmatpush1.bf16.msra.mxu0 0
  %739 = vmatprep.mubr.bf16.mxu0 0
  %740 = vmatmul.mubr.bf16.gmra.mrb[0].mxu0 %v481
  %v741 = vpop.f32.mrb[0].mxu0
  %v742 = vadd.f32 %v433, %v741
  %v743 = vpop.f32.mrb[0].mxu0
  %v744 = vpop.f32.mrb[0].mxu0
  %v745 = vadd.f32 %v434, %v744
  %v746 = vpop.f32.mrb[0].mxu0
  %747 = vmatprep.mubr.bf16.mxu0 0
  %748 = vmatmul.mubr.bf16.gmra.mrb[0].mxu0 %v482
  %v749 = vpop.f32.mrb[0].mxu0
  %v750 = vadd.f32 %v435, %v749
  %v751 = vpop.f32.mrb[0].mxu0
  %v752 = vpop.f32.mrb[0].mxu0
  %v753 = vadd.f32 %v436, %v752
  %v754 = vpop.f32.mrb[0].mxu0
  %755 = vmatprep.mubr.bf16.mxu0 0
  %756 = vmatmul.mubr.bf16.gmra.mrb[0].mxu0 %v483
  %v757 = vpop.f32.mrb[0].mxu0
  %v758 = vadd.f32 %v437, %v757
  %v759 = vpop.f32.mrb[0].mxu0
  %v760 = vpop.f32.mrb[0].mxu0
  %v761 = vadd.f32 %v438, %v760
  %v762 = vpop.f32.mrb[0].mxu0
  %763 = vmatprep.mubr.bf16.mxu0 0
  %764 = vmatmul.mubr.bf16.gmra.mrb[0].mxu0 %v484
  %v765 = vpop.f32.mrb[0].mxu0
  %v766 = vadd.f32 %v439, %v765
  %v767 = vpop.f32.mrb[0].mxu0
  %v768 = vpop.f32.mrb[0].mxu0
  %v769 = vadd.f32 %v440, %v768
  %v770 = vpop.f32.mrb[0].mxu0
  %771 = vmatprep.mubr.bf16.mxu0 0
  %772 = vmatmul.mubr.bf16.gmra.mrb[0].mxu0 %v485
  %v773 = vpop.f32.mrb[0].mxu0
  %v774 = vadd.f32 %v441, %v773
  %v775 = vpop.f32.mrb[0].mxu0
  %v776 = vpop.f32.mrb[0].mxu0
  %v777 = vadd.f32 %v442, %v776
  %v778 = vpop.f32.mrb[0].mxu0
  %779 = vmatprep.mubr.bf16.mxu0 0
  %780 = vmatmul.mubr.bf16.gmra.mrb[0].mxu0 %v486
  %v781 = vpop.f32.mrb[0].mxu0
  %v782 = vadd.f32 %v443, %v781
  %v783 = vpop.f32.mrb[0].mxu0
  %v784 = vpop.f32.mrb[0].mxu0
  %v785 = vadd.f32 %v444, %v784
  %v786 = vpop.f32.mrb[0].mxu0
  %787 = vmatprep.mubr.bf16.mxu0 0
  %788 = vmatmul.mubr.bf16.gmra.mrb[0].mxu0 %v487
  %v789 = vpop.f32.mrb[0].mxu0
  %v790 = vadd.f32 %v445, %v789
  %v791 = vpop.f32.mrb[0].mxu0
  %v792 = vpop.f32.mrb[0].mxu0
  %v793 = vadd.f32 %v446, %v792
  %v794 = vpop.f32.mrb[0].mxu0
  %795 = vmatprep.mubr.bf16.mxu0 0
  %796 = vmatmul.mubr.bf16.gmra.mrb[0].mxu0 %v488
  %v797 = vpop.f32.mrb[0].mxu0
  %v798 = vadd.f32 %v447, %v797
  %v799 = vpop.f32.mrb[0].mxu0
  %v800 = vpop.f32.mrb[0].mxu0
  %v801 = vadd.f32 %v448, %v800
  %v802 = vpop.f32.mrb[0].mxu0
  %803 = vdwg.mxu0
  %v804 = vpack.c.bf16 %v745, %v742
  %v805 = vpack.c.bf16 %v753, %v750
  %v806 = vpack.c.bf16 %v761, %v758
  %v807 = vpack.c.bf16 %v769, %v766
  %v808 = vpack.c.bf16 %v777, %v774
  %v809 = vpack.c.bf16 %v785, %v782
  %v810 = vpack.c.bf16 %v793, %v790
  %v811 = vpack.c.bf16 %v801, %v798
  %812 = vmatprep.subr.bf16.mxu0 0
  %813 = vmatpush1.bf16.msra.mxu0 %v804
  %814 = vmatprep.subr.bf16.mxu0 0
  %815 = vmatpush1.bf16.msra.mxu0 %v805
  %816 = vmatprep.subr.bf16.mxu0 0
  %817 = vmatpush1.bf16.msra.mxu0 %v806
  %818 = vmatprep.subr.bf16.mxu0 0
  %819 = vmatpush1.bf16.msra.mxu0 %v807
  %820 = vmatprep.subr.bf16.mxu0 0
  %821 = vmatpush1.bf16.msra.mxu0 %v808
  %822 = vmatprep.subr.bf16.mxu0 0
  %823 = vmatpush1.bf16.msra.mxu0 %v809
  %824 = vmatprep.subr.bf16.mxu0 0
  %825 = vmatpush1.bf16.msra.mxu0 %v810
  %826 = vmatprep.subr.bf16.mxu0 0
  %827 = vmatpush1.bf16.msra.mxu0 %v811
  %828 = vmatprep.subr.bf16.mxu0 0
  %829 = vmatpush1.bf16.msra.mxu0 0
  %830 = vmatprep.subr.bf16.mxu0 0
  %831 = vmatpush1.bf16.msra.mxu0 0
  %832 = vmatprep.subr.bf16.mxu0 0
  %833 = vmatpush1.bf16.msra.mxu0 0
  %834 = vmatprep.subr.bf16.mxu0 0
  %835 = vmatpush1.bf16.msra.mxu0 0
  %836 = vmatprep.subr.bf16.mxu0 0
  %837 = vmatpush1.bf16.msra.mxu0 0
  %838 = vmatprep.subr.bf16.mxu0 0
  %839 = vmatpush1.bf16.msra.mxu0 0
  %840 = vmatprep.subr.bf16.mxu0 0
  %841 = vmatpush1.bf16.msra.mxu0 0
  %842 = vmatprep.subr.bf16.mxu0 0
  %843 = vmatpush1.bf16.msra.mxu0 0
  %844 = vmatprep.mubr.bf16.mxu0 0
  %845 = vmatmul.mubr.bf16.gmra.mrb[0].mxu0 %v481
  %v846 = vpop.f32.mrb[0].mxu0
  %v847 = vadd.f32 %v433, %v846
  %v848 = vpop.f32.mrb[0].mxu0
  %v849 = vpop.f32.mrb[0].mxu0
  %v850 = vadd.f32 %v434, %v849
  %v851 = vpop.f32.mrb[0].mxu0
  %852 = vmatprep.mubr.bf16.mxu0 0
  %853 = vmatmul.mubr.bf16.gmra.mrb[0].mxu0 %v482
  %v854 = vpop.f32.mrb[0].mxu0
  %v855 = vadd.f32 %v435, %v854
  %v856 = vpop.f32.mrb[0].mxu0
  %v857 = vpop.f32.mrb[0].mxu0
  %v858 = vadd.f32 %v436, %v857
  %v859 = vpop.f32.mrb[0].mxu0
  %860 = vmatprep.mubr.bf16.mxu0 0
  %861 = vmatmul.mubr.bf16.gmra.mrb[0].mxu0 %v483
  %v862 = vpop.f32.mrb[0].mxu0
  %v863 = vadd.f32 %v437, %v862
  %v864 = vpop.f32.mrb[0].mxu0
  %v865 = vpop.f32.mrb[0].mxu0
  %v866 = vadd.f32 %v438, %v865
  %v867 = vpop.f32.mrb[0].mxu0
  %868 = vmatprep.mubr.bf16.mxu0 0
  %869 = vmatmul.mubr.bf16.gmra.mrb[0].mxu0 %v484
  %v870 = vpop.f32.mrb[0].mxu0
  %v871 = vadd.f32 %v439, %v870
  %v872 = vpop.f32.mrb[0].mxu0
  %v873 = vpop.f32.mrb[0].mxu0
  %v874 = vadd.f32 %v440, %v873
  %v875 = vpop.f32.mrb[0].mxu0
  %876 = vmatprep.mubr.bf16.mxu0 0
  %877 = vmatmul.mubr.bf16.gmra.mrb[0].mxu0 %v485
  %v878 = vpop.f32.mrb[0].mxu0
  %v879 = vadd.f32 %v441, %v878
  %v880 = vpop.f32.mrb[0].mxu0
  %v881 = vpop.f32.mrb[0].mxu0
  %v882 = vadd.f32 %v442, %v881
  %v883 = vpop.f32.mrb[0].mxu0
  %884 = vmatprep.mubr.bf16.mxu0 0
  %885 = vmatmul.mubr.bf16.gmra.mrb[0].mxu0 %v486
  %v886 = vpop.f32.mrb[0].mxu0
  %v887 = vadd.f32 %v443, %v886
  %v888 = vpop.f32.mrb[0].mxu0
  %v889 = vpop.f32.mrb[0].mxu0
  %v890 = vadd.f32 %v444, %v889
  %v891 = vpop.f32.mrb[0].mxu0
  %892 = vmatprep.mubr.bf16.mxu0 0
  %893 = vmatmul.mubr.bf16.gmra.mrb[0].mxu0 %v487
  %v894 = vpop.f32.mrb[0].mxu0
  %v895 = vadd.f32 %v445, %v894
  %v896 = vpop.f32.mrb[0].mxu0
  %v897 = vpop.f32.mrb[0].mxu0
  %v898 = vadd.f32 %v446, %v897
  %v899 = vpop.f32.mrb[0].mxu0
  %900 = vmatprep.mubr.bf16.mxu0 0
  %901 = vmatmul.mubr.bf16.gmra.mrb[0].mxu0 %v488
  %v902 = vpop.f32.mrb[0].mxu0
  %v903 = vadd.f32 %v447, %v902
  %v904 = vpop.f32.mrb[0].mxu0
  %v905 = vpop.f32.mrb[0].mxu0
  %v906 = vadd.f32 %v448, %v905
  %v907 = vpop.f32.mrb[0].mxu0
  %908 = vdwg.mxu0
  %v909 = vpack.c.bf16 %v850, %v847
  %v910 = vpack.c.bf16 %v858, %v855
  %v911 = vpack.c.bf16 %v866, %v863
  %v912 = vpack.c.bf16 %v874, %v871
  %v913 = vpack.c.bf16 %v882, %v879
  %v914 = vpack.c.bf16 %v890, %v887
  %v915 = vpack.c.bf16 %v898, %v895
  %v916 = vpack.c.bf16 %v906, %v903
  %917 = vmatprep.subr.bf16.mxu0 0
  %918 = vmatpush1.bf16.msra.mxu0 %v909
  %919 = vmatprep.subr.bf16.mxu0 0
  %920 = vmatpush1.bf16.msra.mxu0 %v910
  %921 = vmatprep.subr.bf16.mxu0 0
  %922 = vmatpush1.bf16.msra.mxu0 %v911
  %923 = vmatprep.subr.bf16.mxu0 0
  %924 = vmatpush1.bf16.msra.mxu0 %v912
  %925 = vmatprep.subr.bf16.mxu0 0
  %926 = vmatpush1.bf16.msra.mxu0 %v913
  %927 = vmatprep.subr.bf16.mxu0 0
  %928 = vmatpush1.bf16.msra.mxu0 %v914
  %929 = vmatprep.subr.bf16.mxu0 0
  %930 = vmatpush1.bf16.msra.mxu0 %v915
  %931 = vmatprep.subr.bf16.mxu0 0
  %932 = vmatpush1.bf16.msra.mxu0 %v916
  %933 = vmatprep.subr.bf16.mxu0 0
  %934 = vmatpush1.bf16.msra.mxu0 0
  %935 = vmatprep.subr.bf16.mxu0 0
  %936 = vmatpush1.bf16.msra.mxu0 0
  %937 = vmatprep.subr.bf16.mxu0 0
  %938 = vmatpush1.bf16.msra.mxu0 0
  %939 = vmatprep.subr.bf16.mxu0 0
  %940 = vmatpush1.bf16.msra.mxu0 0
  %941 = vmatprep.subr.bf16.mxu0 0
  %942 = vmatpush1.bf16.msra.mxu0 0
  %943 = vmatprep.subr.bf16.mxu0 0
  %944 = vmatpush1.bf16.msra.mxu0 0
  %945 = vmatprep.subr.bf16.mxu0 0
  %946 = vmatpush1.bf16.msra.mxu0 0
  %947 = vmatprep.subr.bf16.mxu0 0
  %948 = vmatpush1.bf16.msra.mxu0 0
  %949 = vmatprep.mubr.bf16.mxu0 0
  %950 = vmatmul.mubr.bf16.gmra.mrb[0].mxu0 %v481
  %v951 = vpop.f32.mrb[0].mxu0
  %v952 = vadd.f32 %v433, %v951
  %v953 = vpop.f32.mrb[0].mxu0
  %v954 = vpop.f32.mrb[0].mxu0
  %v955 = vadd.f32 %v434, %v954
  %v956 = vpop.f32.mrb[0].mxu0
  %957 = vmatprep.mubr.bf16.mxu0 0
  %958 = vmatmul.mubr.bf16.gmra.mrb[0].mxu0 %v482
  %v959 = vpop.f32.mrb[0].mxu0
  %v960 = vadd.f32 %v435, %v959
  %v961 = vpop.f32.mrb[0].mxu0
  %v962 = vpop.f32.mrb[0].mxu0
  %v963 = vadd.f32 %v436, %v962
  %v964 = vpop.f32.mrb[0].mxu0
  %965 = vmatprep.mubr.bf16.mxu0 0
  %966 = vmatmul.mubr.bf16.gmra.mrb[0].mxu0 %v483
  %v967 = vpop.f32.mrb[0].mxu0
  %v968 = vadd.f32 %v437, %v967
  %v969 = vpop.f32.mrb[0].mxu0
  %v970 = vpop.f32.mrb[0].mxu0
  %v971 = vadd.f32 %v438, %v970
  %v972 = vpop.f32.mrb[0].mxu0
  %973 = vmatprep.mubr.bf16.mxu0 0
  %974 = vmatmul.mubr.bf16.gmra.mrb[0].mxu0 %v484
  %v975 = vpop.f32.mrb[0].mxu0
  %v976 = vadd.f32 %v439, %v975
  %v977 = vpop.f32.mrb[0].mxu0
  %v978 = vpop.f32.mrb[0].mxu0
  %v979 = vadd.f32 %v440, %v978
  %v980 = vpop.f32.mrb[0].mxu0
  %981 = vmatprep.mubr.bf16.mxu0 0
  %982 = vmatmul.mubr.bf16.gmra.mrb[0].mxu0 %v485
  %v983 = vpop.f32.mrb[0].mxu0
  %v984 = vadd.f32 %v441, %v983
  %v985 = vpop.f32.mrb[0].mxu0
  %v986 = vpop.f32.mrb[0].mxu0
  %v987 = vadd.f32 %v442, %v986
  %v988 = vpop.f32.mrb[0].mxu0
  %989 = vmatprep.mubr.bf16.mxu0 0
  %990 = vmatmul.mubr.bf16.gmra.mrb[0].mxu0 %v486
  %v991 = vpop.f32.mrb[0].mxu0
  %v992 = vadd.f32 %v443, %v991
  %v993 = vpop.f32.mrb[0].mxu0
  %v994 = vpop.f32.mrb[0].mxu0
  %v995 = vadd.f32 %v444, %v994
  %v996 = vpop.f32.mrb[0].mxu0
  %997 = vmatprep.mubr.bf16.mxu0 0
  %998 = vmatmul.mubr.bf16.gmra.mrb[0].mxu0 %v487
  %v999 = vpop.f32.mrb[0].mxu0
  %v1000 = vadd.f32 %v445, %v999
  %v1001 = vpop.f32.mrb[0].mxu0
  %v1002 = vpop.f32.mrb[0].mxu0
  %v1003 = vadd.f32 %v446, %v1002
  %v1004 = vpop.f32.mrb[0].mxu0
  %1005 = vmatprep.mubr.bf16.mxu0 0
  %1006 = vmatmul.mubr.bf16.gmra.mrb[0].mxu0 %v488
  %v1007 = vpop.f32.mrb[0].mxu0
  %v1008 = vadd.f32 %v447, %v1007
  %v1009 = vpop.f32.mrb[0].mxu0
  %v1010 = vpop.f32.mrb[0].mxu0
  %v1011 = vadd.f32 %v448, %v1010
  %v1012 = vpop.f32.mrb[0].mxu0
  %1013 = vdwg.mxu0
  %v1014 = vpack.c.bf16 %v955, %v952
  %v1015 = vpack.c.bf16 %v963, %v960
  %v1016 = vpack.c.bf16 %v971, %v968
  %v1017 = vpack.c.bf16 %v979, %v976
  %v1018 = vpack.c.bf16 %v987, %v984
  %v1019 = vpack.c.bf16 %v995, %v992
  %v1020 = vpack.c.bf16 %v1003, %v1000
  %v1021 = vpack.c.bf16 %v1011, %v1008
  %1022 = vmatprep.subr.bf16.mxu0 0
  %1023 = vmatpush1.bf16.msra.mxu0 %v1014
  %1024 = vmatprep.subr.bf16.mxu0 0
  %1025 = vmatpush1.bf16.msra.mxu0 %v1015
  %1026 = vmatprep.subr.bf16.mxu0 0
  %1027 = vmatpush1.bf16.msra.mxu0 %v1016
  %1028 = vmatprep.subr.bf16.mxu0 0
  %1029 = vmatpush1.bf16.msra.mxu0 %v1017
  %1030 = vmatprep.subr.bf16.mxu0 0
  %1031 = vmatpush1.bf16.msra.mxu0 %v1018
  %1032 = vmatprep.subr.bf16.mxu0 0
  %1033 = vmatpush1.bf16.msra.mxu0 %v1019
  %1034 = vmatprep.subr.bf16.mxu0 0
  %1035 = vmatpush1.bf16.msra.mxu0 %v1020
  %1036 = vmatprep.subr.bf16.mxu0 0
  %1037 = vmatpush1.bf16.msra.mxu0 %v1021
  %1038 = vmatprep.subr.bf16.mxu0 0
  %1039 = vmatpush1.bf16.msra.mxu0 0
  %1040 = vmatprep.subr.bf16.mxu0 0
  %1041 = vmatpush1.bf16.msra.mxu0 0
  %1042 = vmatprep.subr.bf16.mxu0 0
  %1043 = vmatpush1.bf16.msra.mxu0 0
  %1044 = vmatprep.subr.bf16.mxu0 0
  %1045 = vmatpush1.bf16.msra.mxu0 0
  %1046 = vmatprep.subr.bf16.mxu0 0
  %1047 = vmatpush1.bf16.msra.mxu0 0
  %1048 = vmatprep.subr.bf16.mxu0 0
  %1049 = vmatpush1.bf16.msra.mxu0 0
  %1050 = vmatprep.subr.bf16.mxu0 0
  %1051 = vmatpush1.bf16.msra.mxu0 0
  %1052 = vmatprep.subr.bf16.mxu0 0
  %1053 = vmatpush1.bf16.msra.mxu0 0
  %1054 = vmatprep.mubr.bf16.mxu0 0
  %1055 = vmatmul.mubr.bf16.gmra.mrb[0].mxu0 %v481
  %v1056 = vpop.f32.mrb[0].mxu0
  %v1057 = vadd.f32 %v433, %v1056
  %v1058 = vpop.f32.mrb[0].mxu0
  %v1059 = vpop.f32.mrb[0].mxu0
  %v1060 = vadd.f32 %v434, %v1059
  %v1061 = vpop.f32.mrb[0].mxu0
  %1062 = vmatprep.mubr.bf16.mxu0 0
  %1063 = vmatmul.mubr.bf16.gmra.mrb[0].mxu0 %v482
  %v1064 = vpop.f32.mrb[0].mxu0
  %v1065 = vadd.f32 %v435, %v1064
  %v1066 = vpop.f32.mrb[0].mxu0
  %v1067 = vpop.f32.mrb[0].mxu0
  %v1068 = vadd.f32 %v436, %v1067
  %v1069 = vpop.f32.mrb[0].mxu0
  %1070 = vmatprep.mubr.bf16.mxu0 0
  %1071 = vmatmul.mubr.bf16.gmra.mrb[0].mxu0 %v483
  %v1072 = vpop.f32.mrb[0].mxu0
  %v1073 = vadd.f32 %v437, %v1072
  %v1074 = vpop.f32.mrb[0].mxu0
  %v1075 = vpop.f32.mrb[0].mxu0
  %v1076 = vadd.f32 %v438, %v1075
  %v1077 = vpop.f32.mrb[0].mxu0
  %1078 = vmatprep.mubr.bf16.mxu0 0
  %1079 = vmatmul.mubr.bf16.gmra.mrb[0].mxu0 %v484
  %v1080 = vpop.f32.mrb[0].mxu0
  %v1081 = vadd.f32 %v439, %v1080
  %v1082 = vpop.f32.mrb[0].mxu0
  %v1083 = vpop.f32.mrb[0].mxu0
  %v1084 = vadd.f32 %v440, %v1083
  %v1085 = vpop.f32.mrb[0].mxu0
  %1086 = vmatprep.mubr.bf16.mxu0 0
  %1087 = vmatmul.mubr.bf16.gmra.mrb[0].mxu0 %v485
  %v1088 = vpop.f32.mrb[0].mxu0
  %v1089 = vadd.f32 %v441, %v1088
  %v1090 = vpop.f32.mrb[0].mxu0
  %v1091 = vpop.f32.mrb[0].mxu0
  %v1092 = vadd.f32 %v442, %v1091
  %v1093 = vpop.f32.mrb[0].mxu0
  %1094 = vmatprep.mubr.bf16.mxu0 0
  %1095 = vmatmul.mubr.bf16.gmra.mrb[0].mxu0 %v486
  %v1096 = vpop.f32.mrb[0].mxu0
  %v1097 = vadd.f32 %v443, %v1096
  %v1098 = vpop.f32.mrb[0].mxu0
  %v1099 = vpop.f32.mrb[0].mxu0
  %v1100 = vadd.f32 %v444, %v1099
  %v1101 = vpop.f32.mrb[0].mxu0
  %1102 = vmatprep.mubr.bf16.mxu0 0
  %1103 = vmatmul.mubr.bf16.gmra.mrb[0].mxu0 %v487
  %v1104 = vpop.f32.mrb[0].mxu0
  %v1105 = vadd.f32 %v445, %v1104
  %v1106 = vpop.f32.mrb[0].mxu0
  %v1107 = vpop.f32.mrb[0].mxu0
  %v1108 = vadd.f32 %v446, %v1107
  %v1109 = vpop.f32.mrb[0].mxu0
  %1110 = vmatprep.mubr.bf16.mxu0 0
  %1111 = vmatmul.mubr.bf16.gmra.mrb[0].mxu0 %v488
  %v1112 = vpop.f32.mrb[0].mxu0
  %v1113 = vadd.f32 %v447, %v1112
  %v1114 = vpop.f32.mrb[0].mxu0
  %v1115 = vpop.f32.mrb[0].mxu0
  %v1116 = vadd.f32 %v448, %v1115
  %v1117 = vpop.f32.mrb[0].mxu0
  %1118 = vdwg.mxu0
  %v1119 = vpack.c.bf16 %v1060, %v1057
  %v1120 = vpack.c.bf16 %v1068, %v1065
  %v1121 = vpack.c.bf16 %v1076, %v1073
  %v1122 = vpack.c.bf16 %v1084, %v1081
  %v1123 = vpack.c.bf16 %v1092, %v1089
  %v1124 = vpack.c.bf16 %v1100, %v1097
  %v1125 = vpack.c.bf16 %v1108, %v1105
  %v1126 = vpack.c.bf16 %v1116, %v1113
  %1127 = vmatprep.subr.bf16.mxu0 0
  %1128 = vmatpush1.bf16.msra.mxu0 %v1119
  %1129 = vmatprep.subr.bf16.mxu0 0
  %1130 = vmatpush1.bf16.msra.mxu0 %v1120
  %1131 = vmatprep.subr.bf16.mxu0 0
  %1132 = vmatpush1.bf16.msra.mxu0 %v1121
  %1133 = vmatprep.subr.bf16.mxu0 0
  %1134 = vmatpush1.bf16.msra.mxu0 %v1122
  %1135 = vmatprep.subr.bf16.mxu0 0
  %1136 = vmatpush1.bf16.msra.mxu0 %v1123
  %1137 = vmatprep.subr.bf16.mxu0 0
  %1138 = vmatpush1.bf16.msra.mxu0 %v1124
  %1139 = vmatprep.subr.bf16.mxu0 0
  %1140 = vmatpush1.bf16.msra.mxu0 %v1125
  %1141 = vmatprep.subr.bf16.mxu0 0
  %1142 = vmatpush1.bf16.msra.mxu0 %v1126
  %1143 = vmatprep.subr.bf16.mxu0 0
  %1144 = vmatpush1.bf16.msra.mxu0 0
  %1145 = vmatprep.subr.bf16.mxu0 0
  %1146 = vmatpush1.bf16.msra.mxu0 0
  %1147 = vmatprep.subr.bf16.mxu0 0
  %1148 = vmatpush1.bf16.msra.mxu0 0
  %1149 = vmatprep.subr.bf16.mxu0 0
  %1150 = vmatpush1.bf16.msra.mxu0 0
  %1151 = vmatprep.subr.bf16.mxu0 0
  %1152 = vmatpush1.bf16.msra.mxu0 0
  %1153 = vmatprep.subr.bf16.mxu0 0
  %1154 = vmatpush1.bf16.msra.mxu0 0
  %1155 = vmatprep.subr.bf16.mxu0 0
  %1156 = vmatpush1.bf16.msra.mxu0 0
  %1157 = vmatprep.subr.bf16.mxu0 0
  %1158 = vmatpush1.bf16.msra.mxu0 0
  %1159 = vmatprep.mubr.bf16.mxu0 0
  %1160 = vmatmul.mubr.bf16.gmra.mrb[0].mxu0 %v481
  %v1161 = vpop.f32.mrb[0].mxu0
  %v1162 = vadd.f32 %v433, %v1161
  %v1163 = vpop.f32.mrb[0].mxu0
  %v1164 = vpop.f32.mrb[0].mxu0
  %v1165 = vadd.f32 %v434, %v1164
  %v1166 = vpop.f32.mrb[0].mxu0
  %1167 = vmatprep.mubr.bf16.mxu0 0
  %1168 = vmatmul.mubr.bf16.gmra.mrb[0].mxu0 %v482
  %v1169 = vpop.f32.mrb[0].mxu0
  %v1170 = vadd.f32 %v435, %v1169
  %v1171 = vpop.f32.mrb[0].mxu0
  %v1172 = vpop.f32.mrb[0].mxu0
  %v1173 = vadd.f32 %v436, %v1172
  %v1174 = vpop.f32.mrb[0].mxu0
  %1175 = vmatprep.mubr.bf16.mxu0 0
  %1176 = vmatmul.mubr.bf16.gmra.mrb[0].mxu0 %v483
  %v1177 = vpop.f32.mrb[0].mxu0
  %v1178 = vadd.f32 %v437, %v1177
  %v1179 = vpop.f32.mrb[0].mxu0
  %v1180 = vpop.f32.mrb[0].mxu0
  %v1181 = vadd.f32 %v438, %v1180
  %v1182 = vpop.f32.mrb[0].mxu0
  %1183 = vmatprep.mubr.bf16.mxu0 0
  %1184 = vmatmul.mubr.bf16.gmra.mrb[0].mxu0 %v484
  %v1185 = vpop.f32.mrb[0].mxu0
  %v1186 = vadd.f32 %v439, %v1185
  %v1187 = vpop.f32.mrb[0].mxu0
  %v1188 = vpop.f32.mrb[0].mxu0
  %v1189 = vadd.f32 %v440, %v1188
  %v1190 = vpop.f32.mrb[0].mxu0
  %1191 = vmatprep.mubr.bf16.mxu0 0
  %1192 = vmatmul.mubr.bf16.gmra.mrb[0].mxu0 %v485
  %v1193 = vpop.f32.mrb[0].mxu0
  %v1194 = vadd.f32 %v441, %v1193
  %v1195 = vpop.f32.mrb[0].mxu0
  %v1196 = vpop.f32.mrb[0].mxu0
  %v1197 = vadd.f32 %v442, %v1196
  %v1198 = vpop.f32.mrb[0].mxu0
  %1199 = vmatprep.mubr.bf16.mxu0 0
  %1200 = vmatmul.mubr.bf16.gmra.mrb[0].mxu0 %v486
  %v1201 = vpop.f32.mrb[0].mxu0
  %v1202 = vadd.f32 %v443, %v1201
  %v1203 = vpop.f32.mrb[0].mxu0
  %v1204 = vpop.f32.mrb[0].mxu0
  %v1205 = vadd.f32 %v444, %v1204
  %v1206 = vpop.f32.mrb[0].mxu0
  %1207 = vmatprep.mubr.bf16.mxu0 0
  %1208 = vmatmul.mubr.bf16.gmra.mrb[0].mxu0 %v487
  %v1209 = vpop.f32.mrb[0].mxu0
  %v1210 = vadd.f32 %v445, %v1209
  %v1211 = vpop.f32.mrb[0].mxu0
  %v1212 = vpop.f32.mrb[0].mxu0
  %v1213 = vadd.f32 %v446, %v1212
  %v1214 = vpop.f32.mrb[0].mxu0
  %1215 = vmatprep.mubr.bf16.mxu0 0
  %1216 = vmatmul.mubr.bf16.gmra.mrb[0].mxu0 %v488
  %v1217 = vpop.f32.mrb[0].mxu0
  %v1218 = vadd.f32 %v447, %v1217
  %v1219 = vpop.f32.mrb[0].mxu0
  %v1220 = vpop.f32.mrb[0].mxu0
  %v1221 = vadd.f32 %v448, %v1220
  %v1222 = vpop.f32.mrb[0].mxu0
  %1223 = vdwg.mxu0
  %v1224 = vpack.c.bf16 %v1165, %v1162
  %v1225 = vpack.c.bf16 %v1173, %v1170
  %v1226 = vpack.c.bf16 %v1181, %v1178
  %v1227 = vpack.c.bf16 %v1189, %v1186
  %v1228 = vpack.c.bf16 %v1197, %v1194
  %v1229 = vpack.c.bf16 %v1205, %v1202
  %v1230 = vpack.c.bf16 %v1213, %v1210
  %v1231 = vpack.c.bf16 %v1221, %v1218
  %1232 = vmatprep.subr.bf16.mxu0 0
  %1233 = vmatpush1.bf16.msra.mxu0 %v1224
  %1234 = vmatprep.subr.bf16.mxu0 0
  %1235 = vmatpush1.bf16.msra.mxu0 %v1225
  %1236 = vmatprep.subr.bf16.mxu0 0
  %1237 = vmatpush1.bf16.msra.mxu0 %v1226
  %1238 = vmatprep.subr.bf16.mxu0 0
  %1239 = vmatpush1.bf16.msra.mxu0 %v1227
  %1240 = vmatprep.subr.bf16.mxu0 0
  %1241 = vmatpush1.bf16.msra.mxu0 %v1228
  %1242 = vmatprep.subr.bf16.mxu0 0
  %1243 = vmatpush1.bf16.msra.mxu0 %v1229
  %1244 = vmatprep.subr.bf16.mxu0 0
  %1245 = vmatpush1.bf16.msra.mxu0 %v1230
  %1246 = vmatprep.subr.bf16.mxu0 0
  %1247 = vmatpush1.bf16.msra.mxu0 %v1231
  %1248 = vmatprep.subr.bf16.mxu0 0
  %1249 = vmatpush1.bf16.msra.mxu0 0
  %1250 = vmatprep.subr.bf16.mxu0 0
  %1251 = vmatpush1.bf16.msra.mxu0 0
  %1252 = vmatprep.subr.bf16.mxu0 0
  %1253 = vmatpush1.bf16.msra.mxu0 0
  %1254 = vmatprep.subr.bf16.mxu0 0
  %1255 = vmatpush1.bf16.msra.mxu0 0
  %1256 = vmatprep.subr.bf16.mxu0 0
  %1257 = vmatpush1.bf16.msra.mxu0 0
  %1258 = vmatprep.subr.bf16.mxu0 0
  %1259 = vmatpush1.bf16.msra.mxu0 0
  %1260 = vmatprep.subr.bf16.mxu0 0
  %1261 = vmatpush1.bf16.msra.mxu0 0
  %1262 = vmatprep.subr.bf16.mxu0 0
  %1263 = vmatpush1.bf16.msra.mxu0 0
  %1264 = vmatprep.mubr.bf16.mxu0 0
  %1265 = vmatmul.mubr.bf16.gmra.mrb[0].mxu0 %v481
  %v1266 = vpop.f32.mrb[0].mxu0
  %v1267 = vadd.f32 %v433, %v1266
  %v1268 = vpop.f32.mrb[0].mxu0
  %v1269 = vpop.f32.mrb[0].mxu0
  %v1270 = vadd.f32 %v434, %v1269
  %v1271 = vpop.f32.mrb[0].mxu0
  %1272 = vmatprep.mubr.bf16.mxu0 0
  %1273 = vmatmul.mubr.bf16.gmra.mrb[0].mxu0 %v482
  %v1274 = vpop.f32.mrb[0].mxu0
  %v1275 = vadd.f32 %v435, %v1274
  %v1276 = vpop.f32.mrb[0].mxu0
  %v1277 = vpop.f32.mrb[0].mxu0
  %v1278 = vadd.f32 %v436, %v1277
  %v1279 = vpop.f32.mrb[0].mxu0
  %1280 = vmatprep.mubr.bf16.mxu0 0
  %1281 = vmatmul.mubr.bf16.gmra.mrb[0].mxu0 %v483
  %v1282 = vpop.f32.mrb[0].mxu0
  %v1283 = vadd.f32 %v437, %v1282
  %v1284 = vpop.f32.mrb[0].mxu0
  %v1285 = vpop.f32.mrb[0].mxu0
  %v1286 = vadd.f32 %v438, %v1285
  %v1287 = vpop.f32.mrb[0].mxu0
  %1288 = vmatprep.mubr.bf16.mxu0 0
  %1289 = vmatmul.mubr.bf16.gmra.mrb[0].mxu0 %v484
  %v1290 = vpop.f32.mrb[0].mxu0
  %v1291 = vadd.f32 %v439, %v1290
  %v1292 = vpop.f32.mrb[0].mxu0
  %v1293 = vpop.f32.mrb[0].mxu0
  %v1294 = vadd.f32 %v440, %v1293
  %v1295 = vpop.f32.mrb[0].mxu0
  %1296 = vmatprep.mubr.bf16.mxu0 0
  %1297 = vmatmul.mubr.bf16.gmra.mrb[0].mxu0 %v485
  %v1298 = vpop.f32.mrb[0].mxu0
  %v1299 = vadd.f32 %v441, %v1298
  %v1300 = vpop.f32.mrb[0].mxu0
  %v1301 = vpop.f32.mrb[0].mxu0
  %v1302 = vadd.f32 %v442, %v1301
  %v1303 = vpop.f32.mrb[0].mxu0
  %1304 = vmatprep.mubr.bf16.mxu0 0
  %1305 = vmatmul.mubr.bf16.gmra.mrb[0].mxu0 %v486
  %v1306 = vpop.f32.mrb[0].mxu0
  %v1307 = vadd.f32 %v443, %v1306
  %v1308 = vpop.f32.mrb[0].mxu0
  %v1309 = vpop.f32.mrb[0].mxu0
  %v1310 = vadd.f32 %v444, %v1309
  %v1311 = vpop.f32.mrb[0].mxu0
  %1312 = vmatprep.mubr.bf16.mxu0 0
  %1313 = vmatmul.mubr.bf16.gmra.mrb[0].mxu0 %v487
  %v1314 = vpop.f32.mrb[0].mxu0
  %v1315 = vadd.f32 %v445, %v1314
  %v1316 = vpop.f32.mrb[0].mxu0
  %v1317 = vpop.f32.mrb[0].mxu0
  %v1318 = vadd.f32 %v446, %v1317
  %v1319 = vpop.f32.mrb[0].mxu0
  %1320 = vmatprep.mubr.bf16.mxu0 0
  %1321 = vmatmul.mubr.bf16.gmra.mrb[0].mxu0 %v488
  %v1322 = vpop.f32.mrb[0].mxu0
  %v1323 = vadd.f32 %v447, %v1322
  %v1324 = vpop.f32.mrb[0].mxu0
  %v1325 = vpop.f32.mrb[0].mxu0
  %v1326 = vadd.f32 %v448, %v1325
  %v1327 = vpop.f32.mrb[0].mxu0
  %1328 = vdwg.mxu0
  %v1329 = vpack.c.bf16 %v1270, %v1267
  %v1330 = vpack.c.bf16 %v1278, %v1275
  %v1331 = vpack.c.bf16 %v1286, %v1283
  %v1332 = vpack.c.bf16 %v1294, %v1291
  %v1333 = vpack.c.bf16 %v1302, %v1299
  %v1334 = vpack.c.bf16 %v1310, %v1307
  %v1335 = vpack.c.bf16 %v1318, %v1315
  %v1336 = vpack.c.bf16 %v1326, %v1323
  %1337 = vmatprep.subr.bf16.mxu0 0
  %1338 = vmatpush1.bf16.msra.mxu0 %v1329
  %1339 = vmatprep.subr.bf16.mxu0 0
  %1340 = vmatpush1.bf16.msra.mxu0 %v1330
  %1341 = vmatprep.subr.bf16.mxu0 0
  %1342 = vmatpush1.bf16.msra.mxu0 %v1331
  %1343 = vmatprep.subr.bf16.mxu0 0
  %1344 = vmatpush1.bf16.msra.mxu0 %v1332
  %1345 = vmatprep.subr.bf16.mxu0 0
  %1346 = vmatpush1.bf16.msra.mxu0 %v1333
  %1347 = vmatprep.subr.bf16.mxu0 0
  %1348 = vmatpush1.bf16.msra.mxu0 %v1334
  %1349 = vmatprep.subr.bf16.mxu0 0
  %1350 = vmatpush1.bf16.msra.mxu0 %v1335
  %1351 = vmatprep.subr.bf16.mxu0 0
  %1352 = vmatpush1.bf16.msra.mxu0 %v1336
  %1353 = vmatprep.subr.bf16.mxu0 0
  %1354 = vmatpush1.bf16.msra.mxu0 0
  %1355 = vmatprep.subr.bf16.mxu0 0
  %1356 = vmatpush1.bf16.msra.mxu0 0
  %1357 = vmatprep.subr.bf16.mxu0 0
  %1358 = vmatpush1.bf16.msra.mxu0 0
  %1359 = vmatprep.subr.bf16.mxu0 0
  %1360 = vmatpush1.bf16.msra.mxu0 0
  %1361 = vmatprep.subr.bf16.mxu0 0
  %1362 = vmatpush1.bf16.msra.mxu0 0
  %1363 = vmatprep.subr.bf16.mxu0 0
  %1364 = vmatpush1.bf16.msra.mxu0 0
  %1365 = vmatprep.subr.bf16.mxu0 0
  %1366 = vmatpush1.bf16.msra.mxu0 0
  %1367 = vmatprep.subr.bf16.mxu0 0
  %1368 = vmatpush1.bf16.msra.mxu0 0
  %1369 = vmatprep.mubr.bf16.mxu0 0
  %1370 = vmatmul.mubr.bf16.gmra.mrb[0].mxu0 %v481
  %v1371 = vpop.f32.mrb[0].mxu0
  %v1372 = vadd.f32 %v433, %v1371
  %v1373 = vpop.f32.mrb[0].mxu0
  %v1374 = vpop.f32.mrb[0].mxu0
  %v1375 = vadd.f32 %v434, %v1374
  %v1376 = vpop.f32.mrb[0].mxu0
  %1377 = vmatprep.mubr.bf16.mxu0 0
  %1378 = vmatmul.mubr.bf16.gmra.mrb[0].mxu0 %v482
  %v1379 = vpop.f32.mrb[0].mxu0
  %v1380 = vadd.f32 %v435, %v1379
  %v1381 = vpop.f32.mrb[0].mxu0
  %v1382 = vpop.f32.mrb[0].mxu0
  %v1383 = vadd.f32 %v436, %v1382
  %v1384 = vpop.f32.mrb[0].mxu0
  %1385 = vmatprep.mubr.bf16.mxu0 0
  %1386 = vmatmul.mubr.bf16.gmra.mrb[0].mxu0 %v483
  %v1387 = vpop.f32.mrb[0].mxu0
  %v1388 = vadd.f32 %v437, %v1387
  %v1389 = vpop.f32.mrb[0].mxu0
  %v1390 = vpop.f32.mrb[0].mxu0
  %v1391 = vadd.f32 %v438, %v1390
  %v1392 = vpop.f32.mrb[0].mxu0
  %1393 = vmatprep.mubr.bf16.mxu0 0
  %1394 = vmatmul.mubr.bf16.gmra.mrb[0].mxu0 %v484
  %v1395 = vpop.f32.mrb[0].mxu0
  %v1396 = vadd.f32 %v439, %v1395
  %v1397 = vpop.f32.mrb[0].mxu0
  %v1398 = vpop.f32.mrb[0].mxu0
  %v1399 = vadd.f32 %v440, %v1398
  %v1400 = vpop.f32.mrb[0].mxu0
  %1401 = vmatprep.mubr.bf16.mxu0 0
  %1402 = vmatmul.mubr.bf16.gmra.mrb[0].mxu0 %v485
  %v1403 = vpop.f32.mrb[0].mxu0
  %v1404 = vadd.f32 %v441, %v1403
  %v1405 = vpop.f32.mrb[0].mxu0
  %v1406 = vpop.f32.mrb[0].mxu0
  %v1407 = vadd.f32 %v442, %v1406
  %v1408 = vpop.f32.mrb[0].mxu0
  %1409 = vmatprep.mubr.bf16.mxu0 0
  %1410 = vmatmul.mubr.bf16.gmra.mrb[0].mxu0 %v486
  %v1411 = vpop.f32.mrb[0].mxu0
  %v1412 = vadd.f32 %v443, %v1411
  %v1413 = vpop.f32.mrb[0].mxu0
  %v1414 = vpop.f32.mrb[0].mxu0
  %v1415 = vadd.f32 %v444, %v1414
  %v1416 = vpop.f32.mrb[0].mxu0
  %1417 = vmatprep.mubr.bf16.mxu0 0
  %1418 = vmatmul.mubr.bf16.gmra.mrb[0].mxu0 %v487
  %v1419 = vpop.f32.mrb[0].mxu0
  %v1420 = vadd.f32 %v445, %v1419
  %v1421 = vpop.f32.mrb[0].mxu0
  %v1422 = vpop.f32.mrb[0].mxu0
  %v1423 = vadd.f32 %v446, %v1422
  %v1424 = vpop.f32.mrb[0].mxu0
  %1425 = vmatprep.mubr.bf16.mxu0 0
  %1426 = vmatmul.mubr.bf16.gmra.mrb[0].mxu0 %v488
  %v1427 = vpop.f32.mrb[0].mxu0
  %v1428 = vadd.f32 %v447, %v1427
  %v1429 = vpop.f32.mrb[0].mxu0
  %v1430 = vpop.f32.mrb[0].mxu0
  %v1431 = vadd.f32 %v448, %v1430
  %v1432 = vpop.f32.mrb[0].mxu0
  %1433 = vdwg.mxu0
  %v1434 = vpack.c.bf16 %v1375, %v1372
  %v1435 = vpack.c.bf16 %v1383, %v1380
  %v1436 = vpack.c.bf16 %v1391, %v1388
  %v1437 = vpack.c.bf16 %v1399, %v1396
  %v1438 = vpack.c.bf16 %v1407, %v1404
  %v1439 = vpack.c.bf16 %v1415, %v1412
  %v1440 = vpack.c.bf16 %v1423, %v1420
  %v1441 = vpack.c.bf16 %v1431, %v1428
  %1442 = vmatprep.subr.bf16.mxu0 0
  %1443 = vmatpush1.bf16.msra.mxu0 %v1434
  %1444 = vmatprep.subr.bf16.mxu0 0
  %1445 = vmatpush1.bf16.msra.mxu0 %v1435
  %1446 = vmatprep.subr.bf16.mxu0 0
  %1447 = vmatpush1.bf16.msra.mxu0 %v1436
  %1448 = vmatprep.subr.bf16.mxu0 0
  %1449 = vmatpush1.bf16.msra.mxu0 %v1437
  %1450 = vmatprep.subr.bf16.mxu0 0
  %1451 = vmatpush1.bf16.msra.mxu0 %v1438
  %1452 = vmatprep.subr.bf16.mxu0 0
  %1453 = vmatpush1.bf16.msra.mxu0 %v1439
  %1454 = vmatprep.subr.bf16.mxu0 0
  %1455 = vmatpush1.bf16.msra.mxu0 %v1440
  %1456 = vmatprep.subr.bf16.mxu0 0
  %1457 = vmatpush1.bf16.msra.mxu0 %v1441
  %1458 = vmatprep.subr.bf16.mxu0 0
  %1459 = vmatpush1.bf16.msra.mxu0 0
  %1460 = vmatprep.subr.bf16.mxu0 0
  %1461 = vmatpush1.bf16.msra.mxu0 0
  %1462 = vmatprep.subr.bf16.mxu0 0
  %1463 = vmatpush1.bf16.msra.mxu0 0
  %1464 = vmatprep.subr.bf16.mxu0 0
  %1465 = vmatpush1.bf16.msra.mxu0 0
  %1466 = vmatprep.subr.bf16.mxu0 0
  %1467 = vmatpush1.bf16.msra.mxu0 0
  %1468 = vmatprep.subr.bf16.mxu0 0
  %1469 = vmatpush1.bf16.msra.mxu0 0
  %1470 = vmatprep.subr.bf16.mxu0 0
  %1471 = vmatpush1.bf16.msra.mxu0 0
  %1472 = vmatprep.subr.bf16.mxu0 0
  %1473 = vmatpush1.bf16.msra.mxu0 0
  %1474 = vmatprep.mubr.bf16.mxu0 0
  %1475 = vmatmul.mubr.bf16.gmra.mrb[0].mxu0 %v481
  %v1476 = vpop.f32.mrb[0].mxu0
  %v1477 = vadd.f32 %v433, %v1476
  %v1478 = vpop.f32.mrb[0].mxu0
  %v1479 = vpop.f32.mrb[0].mxu0
  %v1480 = vadd.f32 %v434, %v1479
  %v1481 = vpop.f32.mrb[0].mxu0
  %1482 = vmatprep.mubr.bf16.mxu0 0
  %1483 = vmatmul.mubr.bf16.gmra.mrb[0].mxu0 %v482
  %v1484 = vpop.f32.mrb[0].mxu0
  %v1485 = vadd.f32 %v435, %v1484
  %v1486 = vpop.f32.mrb[0].mxu0
  %v1487 = vpop.f32.mrb[0].mxu0
  %v1488 = vadd.f32 %v436, %v1487
  %v1489 = vpop.f32.mrb[0].mxu0
  %1490 = vmatprep.mubr.bf16.mxu0 0
  %1491 = vmatmul.mubr.bf16.gmra.mrb[0].mxu0 %v483
  %v1492 = vpop.f32.mrb[0].mxu0
  %v1493 = vadd.f32 %v437, %v1492
  %v1494 = vpop.f32.mrb[0].mxu0
  %v1495 = vpop.f32.mrb[0].mxu0
  %v1496 = vadd.f32 %v438, %v1495
  %v1497 = vpop.f32.mrb[0].mxu0
  %1498 = vmatprep.mubr.bf16.mxu0 0
  %1499 = vmatmul.mubr.bf16.gmra.mrb[0].mxu0 %v484
  %v1500 = vpop.f32.mrb[0].mxu0
  %v1501 = vadd.f32 %v439, %v1500
  %v1502 = vpop.f32.mrb[0].mxu0
  %v1503 = vpop.f32.mrb[0].mxu0
  %v1504 = vadd.f32 %v440, %v1503
  %v1505 = vpop.f32.mrb[0].mxu0
  %1506 = vmatprep.mubr.bf16.mxu0 0
  %1507 = vmatmul.mubr.bf16.gmra.mrb[0].mxu0 %v485
  %v1508 = vpop.f32.mrb[0].mxu0
  %v1509 = vadd.f32 %v441, %v1508
  %v1510 = vpop.f32.mrb[0].mxu0
  %v1511 = vpop.f32.mrb[0].mxu0
  %v1512 = vadd.f32 %v442, %v1511
  %v1513 = vpop.f32.mrb[0].mxu0
  %1514 = vmatprep.mubr.bf16.mxu0 0
  %1515 = vmatmul.mubr.bf16.gmra.mrb[0].mxu0 %v486
  %v1516 = vpop.f32.mrb[0].mxu0
  %v1517 = vadd.f32 %v443, %v1516
  %v1518 = vpop.f32.mrb[0].mxu0
  %v1519 = vpop.f32.mrb[0].mxu0
  %v1520 = vadd.f32 %v444, %v1519
  %v1521 = vpop.f32.mrb[0].mxu0
  %1522 = vmatprep.mubr.bf16.mxu0 0
  %1523 = vmatmul.mubr.bf16.gmra.mrb[0].mxu0 %v487
  %v1524 = vpop.f32.mrb[0].mxu0
  %v1525 = vadd.f32 %v445, %v1524
  %v1526 = vpop.f32.mrb[0].mxu0
  %v1527 = vpop.f32.mrb[0].mxu0
  %v1528 = vadd.f32 %v446, %v1527
  %v1529 = vpop.f32.mrb[0].mxu0
  %1530 = vmatprep.mubr.bf16.mxu0 0
  %1531 = vmatmul.mubr.bf16.gmra.mrb[0].mxu0 %v488
  %v1532 = vpop.f32.mrb[0].mxu0
  %v1533 = vadd.f32 %v447, %v1532
  %v1534 = vpop.f32.mrb[0].mxu0
  %v1535 = vpop.f32.mrb[0].mxu0
  %v1536 = vadd.f32 %v448, %v1535
  %v1537 = vpop.f32.mrb[0].mxu0
  %1538 = vdwg.mxu0
  %v1539 = vlaneseq
  %v1540 = vand.u32 %v1539, 127
  %vm1541 = vcmp.lt.s32.totalorder %v1540, 8
  %v1542 = vsel %vm1541, %v1477, -1e+30
  %v1543 = vsel %vm1541, %v1480, -1e+30
  %v1544 = vsel %vm1541, %v1485, -1e+30
  %v1545 = vsel %vm1541, %v1488, -1e+30
  %v1546 = vsel %vm1541, %v1493, -1e+30
  %v1547 = vsel %vm1541, %v1496, -1e+30
  %v1548 = vsel %vm1541, %v1501, -1e+30
  %v1549 = vsel %vm1541, %v1504, -1e+30
  %v1550 = vsel %vm1541, %v1509, -1e+30
  %v1551 = vsel %vm1541, %v1512, -1e+30
  %v1552 = vsel %vm1541, %v1517, -1e+30
  %v1553 = vsel %vm1541, %v1520, -1e+30
  %v1554 = vsel %vm1541, %v1525, -1e+30
  %v1555 = vsel %vm1541, %v1528, -1e+30
  %v1556 = vsel %vm1541, %v1533, -1e+30
  %v1557 = vsel %vm1541, %v1536, -1e+30
  %1558 = vmax.xlane.f32.xlu0 %v1542
  %v1559 = vpop.xlane.xlu0 %1558
  %1560 = vmax.xlane.f32.xlu0 %v1543
  %v1561 = vpop.xlane.xlu0 %1560
  %1562 = vmax.xlane.f32.xlu0 %v1544
  %v1563 = vpop.xlane.xlu0 %1562
  %1564 = vmax.xlane.f32.xlu0 %v1545
  %v1565 = vpop.xlane.xlu0 %1564
  %1566 = vmax.xlane.f32.xlu0 %v1546
  %v1567 = vpop.xlane.xlu0 %1566
  %1568 = vmax.xlane.f32.xlu0 %v1547
  %v1569 = vpop.xlane.xlu0 %1568
  %1570 = vmax.xlane.f32.xlu0 %v1548
  %v1571 = vpop.xlane.xlu0 %1570
  %1572 = vmax.xlane.f32.xlu0 %v1549
  %v1573 = vpop.xlane.xlu0 %1572
  %1574 = vmax.xlane.f32.xlu0 %v1550
  %v1575 = vpop.xlane.xlu0 %1574
  %1576 = vmax.xlane.f32.xlu0 %v1551
  %v1577 = vpop.xlane.xlu0 %1576
  %1578 = vmax.xlane.f32.xlu0 %v1552
  %v1579 = vpop.xlane.xlu0 %1578
  %1580 = vmax.xlane.f32.xlu0 %v1553
  %v1581 = vpop.xlane.xlu0 %1580
  %1582 = vmax.xlane.f32.xlu0 %v1554
  %v1583 = vpop.xlane.xlu0 %1582
  %1584 = vmax.xlane.f32.xlu0 %v1555
  %v1585 = vpop.xlane.xlu0 %1584
  %1586 = vmax.xlane.f32.xlu0 %v1556
  %v1587 = vpop.xlane.xlu0 %1586
  %1588 = vmax.xlane.f32.xlu0 %v1557
  %v1589 = vpop.xlane.xlu0 %1588
  %v1590 = vsub.f32 %v1542, %v1559
  %v1591 = vsub.f32 %v1543, %v1561
  %v1592 = vsub.f32 %v1544, %v1563
  %v1593 = vsub.f32 %v1545, %v1565
  %v1594 = vsub.f32 %v1546, %v1567
  %v1595 = vsub.f32 %v1547, %v1569
  %v1596 = vsub.f32 %v1548, %v1571
  %v1597 = vsub.f32 %v1549, %v1573
  %v1598 = vsub.f32 %v1550, %v1575
  %v1599 = vsub.f32 %v1551, %v1577
  %v1600 = vsub.f32 %v1552, %v1579
  %v1601 = vsub.f32 %v1553, %v1581
  %v1602 = vsub.f32 %v1554, %v1583
  %v1603 = vsub.f32 %v1555, %v1585
  %v1604 = vsub.f32 %v1556, %v1587
  %v1605 = vsub.f32 %v1557, %v1589
  %v1606 = vmul.f32 %v1590, 1.442695
  %v1607 = vpow.pop %v1606
  %v1608 = vmul.f32 %v1591, 1.442695
  %v1609 = vpow.pop %v1608
  %v1610 = vmul.f32 %v1592, 1.442695
  %v1611 = vpow.pop %v1610
  %v1612 = vmul.f32 %v1593, 1.442695
  %v1613 = vpow.pop %v1612
  %v1614 = vmul.f32 %v1594, 1.442695
  %v1615 = vpow.pop %v1614
  %v1616 = vmul.f32 %v1595, 1.442695
  %v1617 = vpow.pop %v1616
  %v1618 = vmul.f32 %v1596, 1.442695
  %v1619 = vpow.pop %v1618
  %v1620 = vmul.f32 %v1597, 1.442695
  %v1621 = vpow.pop %v1620
  %v1622 = vmul.f32 %v1598, 1.442695
  %v1623 = vpow.pop %v1622
  %v1624 = vmul.f32 %v1599, 1.442695
  %v1625 = vpow.pop %v1624
  %v1626 = vmul.f32 %v1600, 1.442695
  %v1627 = vpow.pop %v1626
  %v1628 = vmul.f32 %v1601, 1.442695
  %v1629 = vpow.pop %v1628
  %v1630 = vmul.f32 %v1602, 1.442695
  %v1631 = vpow.pop %v1630
  %v1632 = vmul.f32 %v1603, 1.442695
  %v1633 = vpow.pop %v1632
  %v1634 = vmul.f32 %v1604, 1.442695
  %v1635 = vpow.pop %v1634
  %v1636 = vmul.f32 %v1605, 1.442695
  %v1637 = vpow.pop %v1636
  %v1638 = vsel %vm1541, %v1607, 0.0
  %v1639 = vsel %vm1541, %v1609, 0.0
  %v1640 = vsel %vm1541, %v1611, 0.0
  %v1641 = vsel %vm1541, %v1613, 0.0
  %v1642 = vsel %vm1541, %v1615, 0.0
  %v1643 = vsel %vm1541, %v1617, 0.0
  %v1644 = vsel %vm1541, %v1619, 0.0
  %v1645 = vsel %vm1541, %v1621, 0.0
  %v1646 = vsel %vm1541, %v1623, 0.0
  %v1647 = vsel %vm1541, %v1625, 0.0
  %v1648 = vsel %vm1541, %v1627, 0.0
  %v1649 = vsel %vm1541, %v1629, 0.0
  %v1650 = vsel %vm1541, %v1631, 0.0
  %v1651 = vsel %vm1541, %v1633, 0.0
  %v1652 = vsel %vm1541, %v1635, 0.0
  %v1653 = vsel %vm1541, %v1637, 0.0
  %1654 = vadd.xlane.f32.xlu0 %v1638
  %v1655 = vpop.xlane.xlu0 %1654
  %1656 = vadd.xlane.f32.xlu0 %v1639
  %v1657 = vpop.xlane.xlu0 %1656
  %1658 = vadd.xlane.f32.xlu0 %v1640
  %v1659 = vpop.xlane.xlu0 %1658
  %1660 = vadd.xlane.f32.xlu0 %v1641
  %v1661 = vpop.xlane.xlu0 %1660
  %1662 = vadd.xlane.f32.xlu0 %v1642
  %v1663 = vpop.xlane.xlu0 %1662
  %1664 = vadd.xlane.f32.xlu0 %v1643
  %v1665 = vpop.xlane.xlu0 %1664
  %1666 = vadd.xlane.f32.xlu0 %v1644
  %v1667 = vpop.xlane.xlu0 %1666
  %1668 = vadd.xlane.f32.xlu0 %v1645
  %v1669 = vpop.xlane.xlu0 %1668
  %1670 = vadd.xlane.f32.xlu0 %v1646
  %v1671 = vpop.xlane.xlu0 %1670
  %1672 = vadd.xlane.f32.xlu0 %v1647
  %v1673 = vpop.xlane.xlu0 %1672
  %1674 = vadd.xlane.f32.xlu0 %v1648
  %v1675 = vpop.xlane.xlu0 %1674
  %1676 = vadd.xlane.f32.xlu0 %v1649
  %v1677 = vpop.xlane.xlu0 %1676
  %1678 = vadd.xlane.f32.xlu0 %v1650
  %v1679 = vpop.xlane.xlu0 %1678
  %1680 = vadd.xlane.f32.xlu0 %v1651
  %v1681 = vpop.xlane.xlu0 %1680
  %1682 = vadd.xlane.f32.xlu0 %v1652
  %v1683 = vpop.xlane.xlu0 %1682
  %1684 = vadd.xlane.f32.xlu0 %v1653
  %v1685 = vpop.xlane.xlu0 %1684
  %v1686 = vlog2.pop %v1655
  %v1687 = vmul.f32 %v1686, 0.6931472
  %v1688 = vlog2.pop %v1657
  %v1689 = vmul.f32 %v1688, 0.6931472
  %v1690 = vlog2.pop %v1659
  %v1691 = vmul.f32 %v1690, 0.6931472
  %v1692 = vlog2.pop %v1661
  %v1693 = vmul.f32 %v1692, 0.6931472
  %v1694 = vlog2.pop %v1663
  %v1695 = vmul.f32 %v1694, 0.6931472
  %v1696 = vlog2.pop %v1665
  %v1697 = vmul.f32 %v1696, 0.6931472
  %v1698 = vlog2.pop %v1667
  %v1699 = vmul.f32 %v1698, 0.6931472
  %v1700 = vlog2.pop %v1669
  %v1701 = vmul.f32 %v1700, 0.6931472
  %v1702 = vlog2.pop %v1671
  %v1703 = vmul.f32 %v1702, 0.6931472
  %v1704 = vlog2.pop %v1673
  %v1705 = vmul.f32 %v1704, 0.6931472
  %v1706 = vlog2.pop %v1675
  %v1707 = vmul.f32 %v1706, 0.6931472
  %v1708 = vlog2.pop %v1677
  %v1709 = vmul.f32 %v1708, 0.6931472
  %v1710 = vlog2.pop %v1679
  %v1711 = vmul.f32 %v1710, 0.6931472
  %v1712 = vlog2.pop %v1681
  %v1713 = vmul.f32 %v1712, 0.6931472
  %v1714 = vlog2.pop %v1683
  %v1715 = vmul.f32 %v1714, 0.6931472
  %v1716 = vlog2.pop %v1685
  %v1717 = vmul.f32 %v1716, 0.6931472
  %v1718 = vsub.f32 %v1590, %v1687
  %v1719 = vsub.f32 %v1591, %v1689
  %v1720 = vsub.f32 %v1592, %v1691
  %v1721 = vsub.f32 %v1593, %v1693
  %v1722 = vsub.f32 %v1594, %v1695
  %v1723 = vsub.f32 %v1595, %v1697
  %v1724 = vsub.f32 %v1596, %v1699
  %v1725 = vsub.f32 %v1597, %v1701
  %v1726 = vsub.f32 %v1598, %v1703
  %v1727 = vsub.f32 %v1599, %v1705
  %v1728 = vsub.f32 %v1600, %v1707
  %v1729 = vsub.f32 %v1601, %v1709
  %v1730 = vsub.f32 %v1602, %v1711
  %v1731 = vsub.f32 %v1603, %v1713
  %v1732 = vsub.f32 %v1604, %v1715
  %v1733 = vsub.f32 %v1605, %v1717
  %1734 = vst [vmem:[%s6] sm:$0xff] %v1718
  %1735 = vst [vmem:[%s6 + $0x8] sm:$0xff] %v1719
  %1736 = vst [vmem:[%s6 + $0x10] sm:$0xff] %v1720
  %1737 = vst [vmem:[%s6 + $0x18] sm:$0xff] %v1721
  %1738 = vst [vmem:[%s6 + $0x20] sm:$0xff] %v1722
  %1739 = vst [vmem:[%s6 + $0x28] sm:$0xff] %v1723
  %1740 = vst [vmem:[%s6 + $0x30] sm:$0xff] %v1724
  %1741 = vst [vmem:[%s6 + $0x38] sm:$0xff] %v1725
  %1742 = vst [vmem:[%s6 + $0x40] sm:$0xff] %v1726
  %1743 = vst [vmem:[%s6 + $0x48] sm:$0xff] %v1727
  %1744 = vst [vmem:[%s6 + $0x50] sm:$0xff] %v1728
  %1745 = vst [vmem:[%s6 + $0x58] sm:$0xff] %v1729
  %1746 = vst [vmem:[%s6 + $0x60] sm:$0xff] %v1730
  %1747 = vst [vmem:[%s6 + $0x68] sm:$0xff] %v1731
  %1748 = vst [vmem:[%s6 + $0x70] sm:$0xff] %v1732
  %1749 = vst [vmem:[%s6 + $0x78] sm:$0xff] %v1733
  // Predicated region
  $region26: #{appnp_net_forward.1} parent=0 // pred_check
    _
  $region27: #{appnp_net_forward.1} parent=0 // pred_check_branch
    %1751 = sbr.rel (0) target = $region29
  $region28: #{appnp_net_forward.1} parent=0 // pred_region
    _
  $region29: #{appnp_net_forward.1} parent=0 // pred_fallthru
    _
  // Predicated region
  $region30: #{appnp_net_forward.1} parent=0 // pred_check
    _
  $region31: #{appnp_net_forward.1} parent=0 // pred_check_branch
    %1753 = sbr.rel (0) target = $region33
  $region32: #{appnp_net_forward.1} parent=0 // pred_region
    _
  $region33: #{appnp_net_forward.1} parent=0 // pred_fallthru
    _

</llo_original>
